<compile_context>
chip_gen: v5e
topology: v5e:2x2
jax: 0.10.0
libtpu: 0.0.40
codegen_flags: <defaults>
</compile_context>

<pallas_src>
import functools

import jax
import jax.numpy as jnp
from jax.experimental import pallas as pl
from jax.experimental.pallas import tpu as pltpu

CONTEXT_LENGTH = 8       # T
NUM_EMBEDDINGS = 32      # C
NUM_HEADS = 4
HEAD_SIZE = NUM_EMBEDDINGS // NUM_HEADS  # 8


def pack_params(wq, wk, wv, w_proj_t, b_proj):
    """Call ONCE at init, outside the hot path.

    wq/wk/wv: (H, C, hs) in already-transposed (in, out) per-head layout.
    w_proj_t: (C, C) pre-transposed projection weight (torch weight.T).
    b_proj:   (C,) projection bias.

    Returns (wqkv, wp, b2d):
      wqkv: (C, 3C) = [Wq_all * hs^-0.5 | Wk_all | Wv_all], head h of each
            block occupying columns h*hs:(h+1)*hs.
      wp:   (C, C)   projection weight (in, out).
      b2d:  (1, C)   projection bias.
    """
    H, C, hs = wq.shape
    scale = jnp.asarray(hs, jnp.float32) ** -0.5

    def _flat(wh):                              # (H, C, hs) -> (C, H*hs)
        return jnp.transpose(wh, (1, 0, 2)).reshape(C, H * hs)

    wqkv = jnp.concatenate([_flat(wq) * scale, _flat(wk), _flat(wv)], axis=1)
    return wqkv, w_proj_t, b_proj.reshape(1, C)


def _mha_kernel(x_ref, wqkv_ref, wp_ref, b_ref, o_ref, *,
                batch, seq_len, num_heads, head_size):
    # x_ref: (Bg*T, C)  wqkv_ref: (C, 3C)  wp_ref: (C, C)  b_ref: (1, C)
    Bg, T, H, hs = batch, seq_len, num_heads, head_size
    C = H * hs

    x = x_ref[...]                                           # (Bg*T, C)

    # One fused MXU call produces Q, K, V for every head of every sequence.
    # The 1/sqrt(hs) scale is already folded into the Wq columns.
    qkv = jnp.dot(x, wqkv_ref[...],
                  preferred_element_type=jnp.float32)        # (Bg*T, 3C)

    # Compile-time-constant 2-D causal mask; broadcasts against (Bg, T, T).
    row = jax.lax.broadcasted_iota(jnp.int32, (T, T), 0)
    col = jax.lax.broadcasted_iota(jnp.int32, (T, T), 1)
    causal = row >= col                                      # (T, T)

    head_outs = []
    for h in range(H):                 # tiny static loop, trace-time unrolled
        lo = h * hs
        q = qkv[:, lo:lo + hs].reshape(Bg, T, hs)
        k = qkv[:, C + lo:C + lo + hs].reshape(Bg, T, hs)
        v = qkv[:, 2 * C + lo:2 * C + lo + hs].reshape(Bg, T, hs)

        s = jnp.einsum('bqd,bkd->bqk', q, k,
                       preferred_element_type=jnp.float32)   # (Bg, T, T)
        s = jnp.where(causal, s, -jnp.inf)
        # Numerically-stable softmax; the diagonal is always unmasked so the
        # row max is finite and the sum >= 1.  Exact divide (~1e-6 accuracy).
        s = s - jnp.max(s, axis=-1, keepdims=True)
        p = jnp.exp(s)
        p = p / jnp.sum(p, axis=-1, keepdims=True)

        head_outs.append(jnp.einsum('bqk,bkd->bqd', p, v,
                                    preferred_element_type=jnp.float32))

    # Concatenate heads once, then a SINGLE projection matmul + bias.
    cat = jnp.concatenate(head_outs, axis=-1).reshape(Bg * T, C)
    out = jnp.dot(cat, wp_ref[...],
                  preferred_element_type=jnp.float32) + b_ref[...]
    o_ref[...] = out.astype(o_ref.dtype)


def multi_head_attention(x, wqkv, wp, b2d, *, num_heads, grid_blocks=1):
    """x: (B, T, C); wqkv/wp/b2d from pack_params.  Returns (B, T, C)."""
    B, T, C = x.shape
    hs = C // num_heads
    assert num_heads * hs == C
    assert B % grid_blocks == 0
    Bg = B // grid_blocks

    x2 = x.reshape(B * T, C)           # metadata-only reshape in the wrapper

    kernel = functools.partial(_mha_kernel, batch=Bg, seq_len=T,
                               num_heads=num_heads, head_size=hs)

    out2 = pl.pallas_call(
        kernel,
        out_shape=jax.ShapeDtypeStruct((B * T, C), x.dtype),
        grid_spec=pltpu.PrefetchScalarGridSpec(
            num_scalar_prefetch=0,
            grid=(grid_blocks,),
            in_specs=[
                pl.BlockSpec((Bg * T, C), lambda g: (g, 0)),    # x rows
                pl.BlockSpec((C, 3 * C), lambda g: (0, 0)),     # fused Wqkv
                pl.BlockSpec((C, C), lambda g: (0, 0)),         # Wproj^T
                pl.BlockSpec((1, C), lambda g: (0, 0)),         # proj bias
            ],
            out_specs=pl.BlockSpec((Bg * T, C), lambda g: (g, 0)),
        ),
        compiler_params=pltpu.CompilerParams(
            dimension_semantics=(
                ("parallel",) if grid_blocks > 1 else ("arbitrary",))),
    )(x2, wqkv, wp, b2d)

    return out2.reshape(B, T, C)


def _reference(x, wq, wk, wv, w_proj_t, b_proj):
    """Pure-JAX reference matching the PyTorch forward."""
    B, T, C = x.shape
    H, _, hs = wq.shape
    tril = jnp.tril(jnp.ones((T, T)))
    outs = []
    for h in range(H):
        q = x @ wq[h]
        k = x @ wk[h]
        v = x @ wv[h]
        wei = (q @ jnp.swapaxes(k, -2, -1)) * (hs ** -0.5)
        wei = jnp.where(tril == 0, -jnp.inf, wei)
        wei = jax.nn.softmax(wei, axis=-1)
        outs.append(wei @ v)
    cat = jnp.concatenate(outs, axis=-1)
    return cat @ w_proj_t + b_proj


if __name__ == "__main__":
    key = jax.random.PRNGKey(0)
    kx, kq, kk, kv, kp, kb = jax.random.split(key, 6)

    B, T, C, H, hs = 4, CONTEXT_LENGTH, NUM_EMBEDDINGS, NUM_HEADS, HEAD_SIZE

    x = jax.random.normal(kx, (B, T, C), dtype=jnp.float32)
    # torch Linear weight is (out, in); we store the already-transposed
    # (in, out) per-head form the packer expects.
    wq = jax.random.normal(kq, (H, C, hs), dtype=jnp.float32) * 0.1
    wk = jax.random.normal(kk, (H, C, hs), dtype=jnp.float32) * 0.1
    wv = jax.random.normal(kv, (H, C, hs), dtype=jnp.float32) * 0.1
    w_proj_t = jax.random.normal(kp, (C, C), dtype=jnp.float32) * 0.1
    b_proj = jax.random.normal(kb, (C,), dtype=jnp.float32) * 0.1

    # One-time parameter packing (init-time work, not per call).
    wqkv, wp, b2d = pack_params(wq, wk, wv, w_proj_t, b_proj)
    wqkv, wp, b2d = jax.block_until_ready((wqkv, wp, b2d))

    out = multi_head_attention(x, wqkv, wp, b2d, num_heads=H)
    out = jax.block_until_ready(out)

    ref = _reference(x, wq, wk, wv, w_proj_t, b_proj)
    assert out.shape == (B, T, C)
    # Exact softmax divide -> agreement is ~1e-6; tolerance only covers any
    # MXU f32 pass-decomposition differences between Mosaic and XLA.
    assert jnp.allclose(out, ref, atol=1e-3, rtol=1e-3), "mismatch vs reference"

    print("KERNEL_OK")
</pallas_src>

<mosaic_0001>
module attributes {stable_mosaic.version = 11 : i64} {
  func.func @_mha_kernel(%arg0: i32, %arg1: memref<32x32xf32, #tpu.memory_space<vmem>>, %arg2: memref<32x96xf32, #tpu.memory_space<vmem>>, %arg3: memref<32x32xf32, #tpu.memory_space<vmem>>, %arg4: memref<1x32xf32, #tpu.memory_space<vmem>>, %arg5: memref<32x32xf32, #tpu.memory_space<vmem>>) attributes {dimension_semantics = [#tpu.dimension_semantics<arbitrary>], iteration_bounds = array<i64: 1>, scalar_prefetch = 0 : i64, scratch_operands = 0 : i64, tpu.core_type = #tpu.core_type<tc>, window_params = [{transform_indices = @transform_0, window_bounds = array<i64: 32, 32>}, {pipeline_mode = #tpu.pipeline_mode<synchronous>, transform_indices = @transform_1, window_bounds = array<i64: 32, 96>}, {pipeline_mode = #tpu.pipeline_mode<synchronous>, transform_indices = @transform_2, window_bounds = array<i64: 32, 32>}, {pipeline_mode = #tpu.pipeline_mode<synchronous>, transform_indices = @transform_3, window_bounds = array<i64: 1, 32>}, {transform_indices = @transform_4, window_bounds = array<i64: 32, 32>}]} {
    %c0 = arith.constant 0 : index
    %c0_0 = arith.constant 0 : index
    %0 = vector.load %arg1[%c0, %c0_0] : memref<32x32xf32, #tpu.memory_space<vmem>>, vector<32x32xf32>
    %c0_1 = arith.constant 0 : index
    %c0_2 = arith.constant 0 : index
    %1 = vector.load %arg2[%c0_1, %c0_2] : memref<32x96xf32, #tpu.memory_space<vmem>>, vector<32x96xf32>
    %cst = arith.constant dense<0.000000e+00> : vector<32x96xf32>
    %2 = tpu.matmul %0, %1, %cst {dimension_numbers = #tpu.dot_dimension_numbers<[1], [0], [0], [1], [0, 0, 1, 1], [], []>} : vector<32x32xf32>, vector<32x96xf32>, vector<32x96xf32> -> vector<32x96xf32>
    %3 = tpu.iota {dimensions = array<i32: 0>} : vector<8x8xi32>
    %4 = tpu.iota {dimensions = array<i32: 1>} : vector<8x8xi32>
    %5 = arith.cmpi sge, %3, %4 : vector<8x8xi32>
    %6 = vector.extract_strided_slice %2 {offsets = [0, 0], sizes = [32, 8], strides = [1, 1]} : vector<32x96xf32> to vector<32x8xf32>
    %7 = vector.shape_cast %6 : vector<32x8xf32> to vector<4x8x8xf32>
    %8 = vector.extract_strided_slice %2 {offsets = [0, 32], sizes = [32, 8], strides = [1, 1]} : vector<32x96xf32> to vector<32x8xf32>
    %9 = vector.shape_cast %8 : vector<32x8xf32> to vector<4x8x8xf32>
    %10 = vector.extract_strided_slice %2 {offsets = [0, 64], sizes = [32, 8], strides = [1, 1]} : vector<32x96xf32> to vector<32x8xf32>
    %11 = vector.shape_cast %10 : vector<32x8xf32> to vector<4x8x8xf32>
    "tpu.trace_start"() <{level = 10 : i32, message = "bqd,bkd->bqk"}> : () -> ()
    %cst_3 = arith.constant dense<0.000000e+00> : vector<4x8x8xf32>
    %12 = tpu.matmul %7, %9, %cst_3 {dimension_numbers = #tpu.dot_dimension_numbers<[2], [2], [1], [1], [0, 0, 0, 1, 1, 1], [0], [0]>} : vector<4x8x8xf32>, vector<4x8x8xf32>, vector<4x8x8xf32> -> vector<4x8x8xf32>
    %cst_4 = arith.constant 0xFF800000 : f32
    "tpu.trace_stop"() : () -> ()
    %13 = vector.shape_cast %5 : vector<8x8xi1> to vector<1x8x8xi1>
    %14 = vector.broadcast %13 : vector<1x8x8xi1> to vector<4x8x8xi1>
    %15 = vector.broadcast %cst_4 : f32 to vector<4x8x8xf32>
    %16 = arith.select %14, %12, %15 : vector<4x8x8xi1>, vector<4x8x8xf32>
    %cst_5 = arith.constant dense<0xFF800000> : vector<4x8xf32>
    %17 = vector.multi_reduction <maximumf>, %16, %cst_5 [2] : vector<4x8x8xf32> to vector<4x8xf32>
    %18 = vector.shape_cast %17 : vector<4x8xf32> to vector<4x8x1xf32>
    %19 = vector.broadcast %18 : vector<4x8x1xf32> to vector<4x8x8xf32>
    %20 = arith.subf %16, %19 : vector<4x8x8xf32>
    %21 = math.exp %20 : vector<4x8x8xf32>
    %cst_6 = arith.constant dense<0.000000e+00> : vector<4x8xf32>
    %22 = vector.multi_reduction <add>, %21, %cst_6 [2] : vector<4x8x8xf32> to vector<4x8xf32>
    %23 = vector.shape_cast %22 : vector<4x8xf32> to vector<4x8x1xf32>
    %24 = vector.broadcast %23 : vector<4x8x1xf32> to vector<4x8x8xf32>
    %25 = arith.divf %21, %24 : vector<4x8x8xf32>
    "tpu.trace_start"() <{level = 10 : i32, message = "bqk,bkd->bqd"}> : () -> ()
    %cst_7 = arith.constant dense<0.000000e+00> : vector<4x8x8xf32>
    %26 = tpu.matmul %25, %11, %cst_7 {dimension_numbers = #tpu.dot_dimension_numbers<[2], [1], [1], [2], [0, 0, 0, 1, 1, 2], [0], [0]>} : vector<4x8x8xf32>, vector<4x8x8xf32>, vector<4x8x8xf32> -> vector<4x8x8xf32>
    "tpu.trace_stop"() : () -> ()
    %27 = vector.extract_strided_slice %2 {offsets = [0, 8], sizes = [32, 8], strides = [1, 1]} : vector<32x96xf32> to vector<32x8xf32>
    %28 = vector.shape_cast %27 : vector<32x8xf32> to vector<4x8x8xf32>
    %29 = vector.extract_strided_slice %2 {offsets = [0, 40], sizes = [32, 8], strides = [1, 1]} : vector<32x96xf32> to vector<32x8xf32>
    %30 = vector.shape_cast %29 : vector<32x8xf32> to vector<4x8x8xf32>
    %31 = vector.extract_strided_slice %2 {offsets = [0, 72], sizes = [32, 8], strides = [1, 1]} : vector<32x96xf32> to vector<32x8xf32>
    %32 = vector.shape_cast %31 : vector<32x8xf32> to vector<4x8x8xf32>
    "tpu.trace_start"() <{level = 10 : i32, message = "bqd,bkd->bqk"}> : () -> ()
    %cst_8 = arith.constant dense<0.000000e+00> : vector<4x8x8xf32>
    %33 = tpu.matmul %28, %30, %cst_8 {dimension_numbers = #tpu.dot_dimension_numbers<[2], [2], [1], [1], [0, 0, 0, 1, 1, 1], [0], [0]>} : vector<4x8x8xf32>, vector<4x8x8xf32>, vector<4x8x8xf32> -> vector<4x8x8xf32>
    %cst_9 = arith.constant 0xFF800000 : f32
    "tpu.trace_stop"() : () -> ()
    %34 = vector.shape_cast %5 : vector<8x8xi1> to vector<1x8x8xi1>
    %35 = vector.broadcast %34 : vector<1x8x8xi1> to vector<4x8x8xi1>
    %36 = vector.broadcast %cst_9 : f32 to vector<4x8x8xf32>
    %37 = arith.select %35, %33, %36 : vector<4x8x8xi1>, vector<4x8x8xf32>
    %cst_10 = arith.constant dense<0xFF800000> : vector<4x8xf32>
    %38 = vector.multi_reduction <maximumf>, %37, %cst_10 [2] : vector<4x8x8xf32> to vector<4x8xf32>
    %39 = vector.shape_cast %38 : vector<4x8xf32> to vector<4x8x1xf32>
    %40 = vector.broadcast %39 : vector<4x8x1xf32> to vector<4x8x8xf32>
    %41 = arith.subf %37, %40 : vector<4x8x8xf32>
    %42 = math.exp %41 : vector<4x8x8xf32>
    %cst_11 = arith.constant dense<0.000000e+00> : vector<4x8xf32>
    %43 = vector.multi_reduction <add>, %42, %cst_11 [2] : vector<4x8x8xf32> to vector<4x8xf32>
    %44 = vector.shape_cast %43 : vector<4x8xf32> to vector<4x8x1xf32>
    %45 = vector.broadcast %44 : vector<4x8x1xf32> to vector<4x8x8xf32>
    %46 = arith.divf %42, %45 : vector<4x8x8xf32>
    "tpu.trace_start"() <{level = 10 : i32, message = "bqk,bkd->bqd"}> : () -> ()
    %cst_12 = arith.constant dense<0.000000e+00> : vector<4x8x8xf32>
    %47 = tpu.matmul %46, %32, %cst_12 {dimension_numbers = #tpu.dot_dimension_numbers<[2], [1], [1], [2], [0, 0, 0, 1, 1, 2], [0], [0]>} : vector<4x8x8xf32>, vector<4x8x8xf32>, vector<4x8x8xf32> -> vector<4x8x8xf32>
    "tpu.trace_stop"() : () -> ()
    %48 = vector.extract_strided_slice %2 {offsets = [0, 16], sizes = [32, 8], strides = [1, 1]} : vector<32x96xf32> to vector<32x8xf32>
    %49 = vector.shape_cast %48 : vector<32x8xf32> to vector<4x8x8xf32>
    %50 = vector.extract_strided_slice %2 {offsets = [0, 48], sizes = [32, 8], strides = [1, 1]} : vector<32x96xf32> to vector<32x8xf32>
    %51 = vector.shape_cast %50 : vector<32x8xf32> to vector<4x8x8xf32>
    %52 = vector.extract_strided_slice %2 {offsets = [0, 80], sizes = [32, 8], strides = [1, 1]} : vector<32x96xf32> to vector<32x8xf32>
    %53 = vector.shape_cast %52 : vector<32x8xf32> to vector<4x8x8xf32>
    "tpu.trace_start"() <{level = 10 : i32, message = "bqd,bkd->bqk"}> : () -> ()
    %cst_13 = arith.constant dense<0.000000e+00> : vector<4x8x8xf32>
    %54 = tpu.matmul %49, %51, %cst_13 {dimension_numbers = #tpu.dot_dimension_numbers<[2], [2], [1], [1], [0, 0, 0, 1, 1, 1], [0], [0]>} : vector<4x8x8xf32>, vector<4x8x8xf32>, vector<4x8x8xf32> -> vector<4x8x8xf32>
    %cst_14 = arith.constant 0xFF800000 : f32
    "tpu.trace_stop"() : () -> ()
    %55 = vector.shape_cast %5 : vector<8x8xi1> to vector<1x8x8xi1>
    %56 = vector.broadcast %55 : vector<1x8x8xi1> to vector<4x8x8xi1>
    %57 = vector.broadcast %cst_14 : f32 to vector<4x8x8xf32>
    %58 = arith.select %56, %54, %57 : vector<4x8x8xi1>, vector<4x8x8xf32>
    %cst_15 = arith.constant dense<0xFF800000> : vector<4x8xf32>
    %59 = vector.multi_reduction <maximumf>, %58, %cst_15 [2] : vector<4x8x8xf32> to vector<4x8xf32>
    %60 = vector.shape_cast %59 : vector<4x8xf32> to vector<4x8x1xf32>
    %61 = vector.broadcast %60 : vector<4x8x1xf32> to vector<4x8x8xf32>
    %62 = arith.subf %58, %61 : vector<4x8x8xf32>
    %63 = math.exp %62 : vector<4x8x8xf32>
    %cst_16 = arith.constant dense<0.000000e+00> : vector<4x8xf32>
    %64 = vector.multi_reduction <add>, %63, %cst_16 [2] : vector<4x8x8xf32> to vector<4x8xf32>
    %65 = vector.shape_cast %64 : vector<4x8xf32> to vector<4x8x1xf32>
    %66 = vector.broadcast %65 : vector<4x8x1xf32> to vector<4x8x8xf32>
    %67 = arith.divf %63, %66 : vector<4x8x8xf32>
    "tpu.trace_start"() <{level = 10 : i32, message = "bqk,bkd->bqd"}> : () -> ()
    %cst_17 = arith.constant dense<0.000000e+00> : vector<4x8x8xf32>
    %68 = tpu.matmul %67, %53, %cst_17 {dimension_numbers = #tpu.dot_dimension_numbers<[2], [1], [1], [2], [0, 0, 0, 1, 1, 2], [0], [0]>} : vector<4x8x8xf32>, vector<4x8x8xf32>, vector<4x8x8xf32> -> vector<4x8x8xf32>
    "tpu.trace_stop"() : () -> ()
    %69 = vector.extract_strided_slice %2 {offsets = [0, 24], sizes = [32, 8], strides = [1, 1]} : vector<32x96xf32> to vector<32x8xf32>
    %70 = vector.shape_cast %69 : vector<32x8xf32> to vector<4x8x8xf32>
    %71 = vector.extract_strided_slice %2 {offsets = [0, 56], sizes = [32, 8], strides = [1, 1]} : vector<32x96xf32> to vector<32x8xf32>
    %72 = vector.shape_cast %71 : vector<32x8xf32> to vector<4x8x8xf32>
    %73 = vector.extract_strided_slice %2 {offsets = [0, 88], sizes = [32, 8], strides = [1, 1]} : vector<32x96xf32> to vector<32x8xf32>
    %74 = vector.shape_cast %73 : vector<32x8xf32> to vector<4x8x8xf32>
    "tpu.trace_start"() <{level = 10 : i32, message = "bqd,bkd->bqk"}> : () -> ()
    %cst_18 = arith.constant dense<0.000000e+00> : vector<4x8x8xf32>
    %75 = tpu.matmul %70, %72, %cst_18 {dimension_numbers = #tpu.dot_dimension_numbers<[2], [2], [1], [1], [0, 0, 0, 1, 1, 1], [0], [0]>} : vector<4x8x8xf32>, vector<4x8x8xf32>, vector<4x8x8xf32> -> vector<4x8x8xf32>
    %cst_19 = arith.constant 0xFF800000 : f32
    "tpu.trace_stop"() : () -> ()
    %76 = vector.shape_cast %5 : vector<8x8xi1> to vector<1x8x8xi1>
    %77 = vector.broadcast %76 : vector<1x8x8xi1> to vector<4x8x8xi1>
    %78 = vector.broadcast %cst_19 : f32 to vector<4x8x8xf32>
    %79 = arith.select %77, %75, %78 : vector<4x8x8xi1>, vector<4x8x8xf32>
    %cst_20 = arith.constant dense<0xFF800000> : vector<4x8xf32>
    %80 = vector.multi_reduction <maximumf>, %79, %cst_20 [2] : vector<4x8x8xf32> to vector<4x8xf32>
    %81 = vector.shape_cast %80 : vector<4x8xf32> to vector<4x8x1xf32>
    %82 = vector.broadcast %81 : vector<4x8x1xf32> to vector<4x8x8xf32>
    %83 = arith.subf %79, %82 : vector<4x8x8xf32>
    %84 = math.exp %83 : vector<4x8x8xf32>
    %cst_21 = arith.constant dense<0.000000e+00> : vector<4x8xf32>
    %85 = vector.multi_reduction <add>, %84, %cst_21 [2] : vector<4x8x8xf32> to vector<4x8xf32>
    %86 = vector.shape_cast %85 : vector<4x8xf32> to vector<4x8x1xf32>
    %87 = vector.broadcast %86 : vector<4x8x1xf32> to vector<4x8x8xf32>
    %88 = arith.divf %84, %87 : vector<4x8x8xf32>
    "tpu.trace_start"() <{level = 10 : i32, message = "bqk,bkd->bqd"}> : () -> ()
    %cst_22 = arith.constant dense<0.000000e+00> : vector<4x8x8xf32>
    %89 = tpu.matmul %88, %74, %cst_22 {dimension_numbers = #tpu.dot_dimension_numbers<[2], [1], [1], [2], [0, 0, 0, 1, 1, 2], [0], [0]>} : vector<4x8x8xf32>, vector<4x8x8xf32>, vector<4x8x8xf32> -> vector<4x8x8xf32>
    "tpu.trace_stop"() : () -> ()
    %90 = tpu.concatenate %26, %47, %68, %89 in 2 : vector<4x8x8xf32>, vector<4x8x8xf32>, vector<4x8x8xf32>, vector<4x8x8xf32> -> vector<4x8x32xf32>
    %91 = vector.shape_cast %90 : vector<4x8x32xf32> to vector<32x32xf32>
    %c0_23 = arith.constant 0 : index
    %c0_24 = arith.constant 0 : index
    %92 = vector.load %arg3[%c0_23, %c0_24] : memref<32x32xf32, #tpu.memory_space<vmem>>, vector<32x32xf32>
    %cst_25 = arith.constant dense<0.000000e+00> : vector<32x32xf32>
    %93 = tpu.matmul %91, %92, %cst_25 {dimension_numbers = #tpu.dot_dimension_numbers<[1], [0], [0], [1], [0, 0, 1, 1], [], []>} : vector<32x32xf32>, vector<32x32xf32>, vector<32x32xf32> -> vector<32x32xf32>
    %c0_26 = arith.constant 0 : index
    %c0_27 = arith.constant 0 : index
    %94 = vector.load %arg4[%c0_26, %c0_27] : memref<1x32xf32, #tpu.memory_space<vmem>>, vector<1x32xf32>
    %95 = vector.broadcast %94 : vector<1x32xf32> to vector<32x32xf32>
    %96 = arith.addf %93, %95 : vector<32x32xf32>
    %c0_28 = arith.constant 0 : index
    %c0_29 = arith.constant 0 : index
    %97 = vector.load %arg5[%c0_28, %c0_29] : memref<32x32xf32, #tpu.memory_space<vmem>>, vector<32x32xf32>
    tpu.vector_store %arg5[%c0_28, %c0_29], %96 {strides = array<i32>} : memref<32x32xf32, #tpu.memory_space<vmem>>, vector<32x32xf32>,
    return
  }
  func.func @transform_0(%arg0: i32) -> (i32, i32) {
    %c0_i32 = arith.constant 0 : i32
    %c0_i32_0 = arith.constant 0 : i32
    return %arg0, %c0_i32 : i32, i32
  }
  func.func @transform_1(%arg0: i32) -> (i32, i32) {
    %c0_i32 = arith.constant 0 : i32
    %c0_i32_0 = arith.constant 0 : i32
    %c0_i32_1 = arith.constant 0 : i32
    return %c0_i32, %c0_i32_0 : i32, i32
  }
  func.func @transform_2(%arg0: i32) -> (i32, i32) {
    %c0_i32 = arith.constant 0 : i32
    %c0_i32_0 = arith.constant 0 : i32
    %c0_i32_1 = arith.constant 0 : i32
    return %c0_i32, %c0_i32_0 : i32, i32
  }
  func.func @transform_3(%arg0: i32) -> (i32, i32) {
    %c0_i32 = arith.constant 0 : i32
    %c0_i32_0 = arith.constant 0 : i32
    %c0_i32_1 = arith.constant 0 : i32
    return %c0_i32, %c0_i32_0 : i32, i32
  }
  func.func @transform_4(%arg0: i32) -> (i32, i32) {
    %c0_i32 = arith.constant 0 : i32
    %c0_i32_0 = arith.constant 0 : i32
    return %arg0, %c0_i32 : i32, i32
  }
}

</mosaic_0001>

<llo_original>
// kernel: tpu_custom_call.1
$region0: #{tpu_custom_call.1}
  #allocation0 [shape = 'u32[]', space=smem, size = 0x4, offset = 0x4, fixed_abs, tag = 'smem constant byte address 0x4 - core index']
  #allocation1 [shape = 'u32[72,128]{1,0:T(1,128)}', space=vmem, size = 0x9000, scoped, tag = 'internal scratch']
  %s0 = inlined_call_operand.hbm [shape: f32[32,32], index: 0, kind: input, shape index: {}]
  %s1 = inlined_call_operand.hbm [shape: f32[32,96], index: 1, kind: input, shape index: {}]
  %s2 = inlined_call_operand.hbm [shape: f32[32,32], index: 2, kind: input, shape index: {}]
  %s3 = inlined_call_operand.vmem [shape: f32[1,32], index: 3, kind: input, shape index: {}]
  %s4 = inlined_call_operand.hbm [shape: f32[32,32], index: 4, kind: output, shape index: {}]
  %s5 = sld [smem:[#allocation0]]
  $region38: #{tpu_custom_call.1} parent=0
    _
  %s7 = ssub.s32 1, %s5
  %s8 = scalar_select 0, %s7, %s5
  $region1: #{tpu_custom_call.1} parent=0
    #allocation2 [shape = 'u8[16384]{0}', space=vmem, size = 0x4000, scoped, tag = 'input window, operand 0, single buffered']
    #allocation3 [shape = 's32[1]{0}', space=sflag, size = 0x4, scoped, tag = 'scoped memory for tpu_custom_call.1']
    #allocation4 [shape = 's32[1]{0}', space=sflag, size = 0x4, scoped, tag = 'scoped memory for tpu_custom_call.1']
    #allocation5 [shape = 'u8[16384]{0}', space=vmem, size = 0x4000, scoped, tag = 'input window, operand 1, single buffered']
    #allocation6 [shape = 's32[1]{0}', space=sflag, size = 0x4, scoped, tag = 'scoped memory for tpu_custom_call.1']
    #allocation7 [shape = 'u8[16384]{0}', space=vmem, size = 0x4000, scoped, tag = 'input window, operand 2, single buffered']
    #allocation8 [shape = 'u8[16384]{0}', space=vmem, size = 0x4000, scoped, tag = 'output window, operand 0, single buffered']
    %9 = vsyncpa [#allocation3], 0
    %10 = vsyncpa [#allocation6], 0
    %11 = vsyncpa [#allocation4], 0
    // Predicated region
    $region2: #{tpu_custom_call.1} parent=1 // pred_check
      _
    $region3: #{tpu_custom_call.1} parent=1 // pred_check_branch
      %13 = sbr.rel (0) target = $region5
    $region4: #{tpu_custom_call.1} parent=1 // pred_region
      %15 = vsyncadd [#allocation3], 0
      %s16 = sshll.u32 %s0, 4
      %s17 = int_to_ptr.hbm [resolvable:$true] %s16
      %s18 = sshll.u32 [#allocation2], 4
      %s19 = int_to_ptr.vmem [resolvable:$true] %s18
      %24 = dma.hbm_to_vmem [thread:$0]  %s17, 512, %s19, [#allocation3], 128, 128, 8
    $region5: #{tpu_custom_call.1} parent=1 // pred_fallthru
      _
    // Predicated region
    $region6: #{tpu_custom_call.1} parent=1 // pred_check
      _
    $region7: #{tpu_custom_call.1} parent=1 // pred_check_branch
      %26 = sbr.rel (0) target = $region9
    $region8: #{tpu_custom_call.1} parent=1 // pred_region
      %28 = vsyncadd [#allocation6], 0
      %s29 = sshll.u32 %s1, 4
      %s30 = int_to_ptr.hbm [resolvable:$true] %s29
      %s31 = sshll.u32 [#allocation5], 4
      %s32 = int_to_ptr.vmem [resolvable:$true] %s31
      %37 = dma.hbm_to_vmem [thread:$0]  %s30, 512, %s32, [#allocation6], 128, 128, 8
    $region9: #{tpu_custom_call.1} parent=1 // pred_fallthru
      _
    // Predicated region
    $region10: #{tpu_custom_call.1} parent=1 // pred_check
      _
    $region11: #{tpu_custom_call.1} parent=1 // pred_check_branch
      %39 = sbr.rel (0) target = $region13
    $region12: #{tpu_custom_call.1} parent=1 // pred_region
      %41 = vsyncadd [#allocation6], 0
      %s42 = sshll.u32 %s2, 4
      %s43 = int_to_ptr.hbm [resolvable:$true] %s42
      %s44 = sshll.u32 [#allocation7], 4
      %s45 = int_to_ptr.vmem [resolvable:$true] %s44
      %50 = dma.hbm_to_vmem [thread:$0]  %s43, 512, %s45, [#allocation6], 128, 128, 8
    $region13: #{tpu_custom_call.1} parent=1 // pred_fallthru
      _
    // Predicated region
    $region14: #{tpu_custom_call.1} parent=1 // pred_check
      _
    $region15: #{tpu_custom_call.1} parent=1 // pred_check_branch
      %52 = sbr.rel (0) target = $region17
    $region16: #{tpu_custom_call.1} parent=1 // pred_region
      _
    $region17: #{tpu_custom_call.1} parent=1 // pred_fallthru
      _
    // Predicated region
    $region18: #{tpu_custom_call.1} parent=1 // pred_check
      _
    $region19: #{tpu_custom_call.1} parent=1 // pred_check_branch
      %54 = sbr.rel (0) target = $region21
    $region20: #{tpu_custom_call.1} parent=1 // pred_region
      %56 = dma.done [#allocation3], 512
    $region21: #{tpu_custom_call.1} parent=1 // pred_fallthru
      _
    // Predicated region
    $region22: #{tpu_custom_call.1} parent=1 // pred_check
      _
    $region23: #{tpu_custom_call.1} parent=1 // pred_check_branch
      %58 = sbr.rel (0) target = $region25
    $region24: #{tpu_custom_call.1} parent=1 // pred_region
      %60 = dma.done [#allocation6], 512
    $region25: #{tpu_custom_call.1} parent=1 // pred_fallthru
      _
    // Predicated region
    $region26: #{tpu_custom_call.1} parent=1 // pred_check
      _
    $region27: #{tpu_custom_call.1} parent=1 // pred_check_branch
      %62 = sbr.rel (0) target = $region29
    $region28: #{tpu_custom_call.1} parent=1 // pred_region
      %64 = dma.done [#allocation6], 512
    $region29: #{tpu_custom_call.1} parent=1 // pred_fallthru
      _
    %v65 = vld [vmem:[#allocation2] sm:$0xff]
    %v66 = vld [vmem:[#allocation2 + $0x8] sm:$0xff]
    %v67 = vld [vmem:[#allocation2 + $0x10] sm:$0xff]
    %v68 = vld [vmem:[#allocation2 + $0x18] sm:$0xff]
    %v69 = vld [vmem:[#allocation5] sm:$0xff]
    %v70 = vld [vmem:[#allocation5 + $0x8] sm:$0xff]
    %v71 = vld [vmem:[#allocation5 + $0x10] sm:$0xff]
    %v72 = vld [vmem:[#allocation5 + $0x18] sm:$0xff]
    %vm73 = vcmask 261120
    %v75 = vsel %vm73, %v65, 0
    %v78 = vsel %vm73, %v66, 0
    %v81 = vsel %vm73, %v67, 0
    %v84 = vsel %vm73, %v68, 0
    %86 = vmatpush.msra.mxu0 0.0
    %87 = vmatpush.msra.mxu0 0.0
    %88 = vmatpush.msra.mxu0 0.0
    %89 = vmatpush.msra.mxu0 0.0
    %90 = vmatpush.msra.mxu0 0.0
    %91 = vmatpush.msra.mxu0 0.0
    %92 = vmatpush.msra.mxu0 0.0
    %93 = vmatpush.msra.mxu0 0.0
    %94 = vmatpush.msra.mxu0 0.0
    %95 = vmatpush.msra.mxu0 0.0
    %96 = vmatpush.msra.mxu0 0.0
    %97 = vmatpush.msra.mxu0 0.0
    %98 = vmatpush.msra.mxu0 %v72
    %99 = vmatpush.msra.mxu0 %v71
    %100 = vmatpush.msra.mxu0 %v70
    %101 = vmatpush.msra.mxu0 %v69
    %102 = vmatmul.f32.gmra.mxu0 %v75
    %v103 = vpop.f32.mrf.mxu0
    %v104 = vadd.f32 0.0, %v103
    %105 = vmatmul.f32.gmra.mxu0 %v78
    %v106 = vpop.f32.mrf.mxu0
    %v107 = vadd.f32 0.0, %v106
    %108 = vmatmul.f32.gmra.mxu0 %v81
    %v109 = vpop.f32.mrf.mxu0
    %v110 = vadd.f32 0.0, %v109
    %111 = vmatmul.f32.gmra.mxu0 %v84
    %v112 = vpop.f32.mrf.mxu0
    %v113 = vadd.f32 0.0, %v112
    %114 = vdwg.mxu0
    %v115 = vlaneseq
    %v116 = vshrl.u32 %v115, 7
    %v117 = vlaneseq
    %v118 = vand.u32 %v117, 127
    %vm119 = vcmp.ge.s32.totalorder %v116, %v118
    %121 = vrot.lane.b32.xlu0 %v104, 96
    %v122 = vpop.permute.xlu0 %121
    %vm123 = vcmask 64512
    %v124 = vsel %vm123, %v104, 0
    %v126 = vsel %vm123, %v122, 0
    %128 = vmatpush.xpose.msra.mxu0 0.0
    %129 = vmatpush.xpose.msra.mxu0 0.0
    %130 = vmatpush.xpose.msra.mxu0 0.0
    %131 = vmatpush.xpose.msra.mxu0 0.0
    %132 = vmatpush.xpose.msra.mxu0 0.0
    %133 = vmatpush.xpose.msra.mxu0 0.0
    %134 = vmatpush.xpose.msra.mxu0 0.0
    %135 = vmatpush.xpose.msra.mxu0 0.0
    %136 = vmatpush.xpose.msra.mxu0 0.0
    %137 = vmatpush.xpose.msra.mxu0 0.0
    %138 = vmatpush.xpose.msra.mxu0 0.0
    %139 = vmatpush.xpose.msra.mxu0 0.0
    %140 = vmatpush.xpose.msra.mxu0 0.0
    %141 = vmatpush.xpose.msra.mxu0 0.0
    %142 = vmatpush.xpose.msra.mxu0 0.0
    %143 = vmatpush.xpose.msra.mxu0 %v126
    %144 = vmatmul.f32.gmra.mxu0 %v124
    %v145 = vpop.f32.mrf.mxu0
    %v146 = vadd.f32 0.0, %v145
    %147 = vdwg.mxu0
    %149 = vrot.lane.b32.xlu0 %v107, 96
    %v150 = vpop.permute.xlu0 %149
    %v151 = vsel %vm123, %v107, 0
    %v153 = vsel %vm123, %v150, 0
    %155 = vmatpush.xpose.msra.mxu0 0.0
    %156 = vmatpush.xpose.msra.mxu0 0.0
    %157 = vmatpush.xpose.msra.mxu0 0.0
    %158 = vmatpush.xpose.msra.mxu0 0.0
    %159 = vmatpush.xpose.msra.mxu0 0.0
    %160 = vmatpush.xpose.msra.mxu0 0.0
    %161 = vmatpush.xpose.msra.mxu0 0.0
    %162 = vmatpush.xpose.msra.mxu0 0.0
    %163 = vmatpush.xpose.msra.mxu0 0.0
    %164 = vmatpush.xpose.msra.mxu0 0.0
    %165 = vmatpush.xpose.msra.mxu0 0.0
    %166 = vmatpush.xpose.msra.mxu0 0.0
    %167 = vmatpush.xpose.msra.mxu0 0.0
    %168 = vmatpush.xpose.msra.mxu0 0.0
    %169 = vmatpush.xpose.msra.mxu0 0.0
    %170 = vmatpush.xpose.msra.mxu0 %v153
    %171 = vmatmul.f32.gmra.mxu0 %v151
    %v172 = vpop.f32.mrf.mxu0
    %v173 = vadd.f32 0.0, %v172
    %174 = vdwg.mxu0
    %176 = vrot.lane.b32.xlu0 %v110, 96
    %v177 = vpop.permute.xlu0 %176
    %v178 = vsel %vm123, %v110, 0
    %v180 = vsel %vm123, %v177, 0
    %182 = vmatpush.xpose.msra.mxu0 0.0
    %183 = vmatpush.xpose.msra.mxu0 0.0
    %184 = vmatpush.xpose.msra.mxu0 0.0
    %185 = vmatpush.xpose.msra.mxu0 0.0
    %186 = vmatpush.xpose.msra.mxu0 0.0
    %187 = vmatpush.xpose.msra.mxu0 0.0
    %188 = vmatpush.xpose.msra.mxu0 0.0
    %189 = vmatpush.xpose.msra.mxu0 0.0
    %190 = vmatpush.xpose.msra.mxu0 0.0
    %191 = vmatpush.xpose.msra.mxu0 0.0
    %192 = vmatpush.xpose.msra.mxu0 0.0
    %193 = vmatpush.xpose.msra.mxu0 0.0
    %194 = vmatpush.xpose.msra.mxu0 0.0
    %195 = vmatpush.xpose.msra.mxu0 0.0
    %196 = vmatpush.xpose.msra.mxu0 0.0
    %197 = vmatpush.xpose.msra.mxu0 %v180
    %198 = vmatmul.f32.gmra.mxu0 %v178
    %v199 = vpop.f32.mrf.mxu0
    %v200 = vadd.f32 0.0, %v199
    %201 = vdwg.mxu0
    %203 = vrot.lane.b32.xlu0 %v113, 96
    %v204 = vpop.permute.xlu0 %203
    %v205 = vsel %vm123, %v113, 0
    %v207 = vsel %vm123, %v204, 0
    %209 = vmatpush.xpose.msra.mxu0 0.0
    %210 = vmatpush.xpose.msra.mxu0 0.0
    %211 = vmatpush.xpose.msra.mxu0 0.0
    %212 = vmatpush.xpose.msra.mxu0 0.0
    %213 = vmatpush.xpose.msra.mxu0 0.0
    %214 = vmatpush.xpose.msra.mxu0 0.0
    %215 = vmatpush.xpose.msra.mxu0 0.0
    %216 = vmatpush.xpose.msra.mxu0 0.0
    %217 = vmatpush.xpose.msra.mxu0 0.0
    %218 = vmatpush.xpose.msra.mxu0 0.0
    %219 = vmatpush.xpose.msra.mxu0 0.0
    %220 = vmatpush.xpose.msra.mxu0 0.0
    %221 = vmatpush.xpose.msra.mxu0 0.0
    %222 = vmatpush.xpose.msra.mxu0 0.0
    %223 = vmatpush.xpose.msra.mxu0 0.0
    %224 = vmatpush.xpose.msra.mxu0 %v207
    %225 = vmatmul.f32.gmra.mxu0 %v205
    %v226 = vpop.f32.mrf.mxu0
    %v227 = vadd.f32 0.0, %v226
    %228 = vdwg.mxu0
    %v229 = vsel %vm119, 1, 0
    %vm230 = vcmp.eq.s32.totalorder %v229, 1
    %v231 = vsel %vm230, %v146, -inf
    %v232 = vsel %vm230, %v173, -inf
    %v233 = vsel %vm230, %v200, -inf
    %v234 = vsel %vm230, %v227, -inf
    %v235 = vsel %vm123, %v231, -inf
    %236 = vmax.xlane.f32.xlu0 %v235
    %v237 = vpop.xlane.xlu0 %236
    %v238 = vsel %vm123, %v232, -inf
    %239 = vmax.xlane.f32.xlu0 %v238
    %v240 = vpop.xlane.xlu0 %239
    %v241 = vsel %vm123, %v233, -inf
    %242 = vmax.xlane.f32.xlu0 %v241
    %v243 = vpop.xlane.xlu0 %242
    %v244 = vsel %vm123, %v234, -inf
    %245 = vmax.xlane.f32.xlu0 %v244
    %v246 = vpop.xlane.xlu0 %245
    %v247 = vsub.f32 %v231, %v237
    %v248 = vsub.f32 %v232, %v240
    %v249 = vsub.f32 %v233, %v243
    %v250 = vsub.f32 %v234, %v246
    %v251 = vmul.f32 %v247, 1.442695
    %v252 = vpow.pop %v251
    %v253 = vmul.f32 %v248, 1.442695
    %v254 = vpow.pop %v253
    %v255 = vmul.f32 %v249, 1.442695
    %v256 = vpow.pop %v255
    %v257 = vmul.f32 %v250, 1.442695
    %v258 = vpow.pop %v257
    %v259 = vsel %vm123, %v252, 0.0
    %260 = vadd.xlane.f32.xlu0 %v259
    %v261 = vpop.xlane.xlu0 %260
    %v262 = vsel %vm123, %v254, 0.0
    %263 = vadd.xlane.f32.xlu0 %v262
    %v264 = vpop.xlane.xlu0 %263
    %v265 = vsel %vm123, %v256, 0.0
    %266 = vadd.xlane.f32.xlu0 %v265
    %v267 = vpop.xlane.xlu0 %266
    %v268 = vsel %vm123, %v258, 0.0
    %269 = vadd.xlane.f32.xlu0 %v268
    %v270 = vpop.xlane.xlu0 %269
    %v271 = vrcp.pop %v261
    %v272 = vmul.f32 %v261, %v271
    %v273 = vsub.f32 1.0, %v272
    %v274 = vmul.f32 %v271, %v273
    %v275 = vadd.f32 %v271, %v274
    %vm276 = vweird.f32 %v261
    %vm277 = vweird.f32 %v271
    %vm278 = vmor %vm276, %vm277
    %v279 = vsel %vm278, %v271, %v275
    %v280 = vand.u32 2147483647, %v261
    %vm281 = vcmp.eq.f32.partialorder %v280, 8.507059e+37
    %v282 = vand.u32 %v261, 2147483648
    %v283 = vor.u32 1.1754944e-38, %v282
    %v284 = vsel %vm281, %v283, %v279
    %v285 = vmul.f32 %v252, %v284
    %v286 = vrcp.pop %v264
    %v287 = vmul.f32 %v264, %v286
    %v288 = vsub.f32 1.0, %v287
    %v289 = vmul.f32 %v286, %v288
    %v290 = vadd.f32 %v286, %v289
    %vm291 = vweird.f32 %v264
    %vm292 = vweird.f32 %v286
    %vm293 = vmor %vm291, %vm292
    %v294 = vsel %vm293, %v286, %v290
    %v295 = vand.u32 2147483647, %v264
    %vm296 = vcmp.eq.f32.partialorder %v295, 8.507059e+37
    %v297 = vand.u32 %v264, 2147483648
    %v298 = vor.u32 1.1754944e-38, %v297
    %v299 = vsel %vm296, %v298, %v294
    %v300 = vmul.f32 %v254, %v299
    %v301 = vrcp.pop %v267
    %v302 = vmul.f32 %v267, %v301
    %v303 = vsub.f32 1.0, %v302
    %v304 = vmul.f32 %v301, %v303
    %v305 = vadd.f32 %v301, %v304
    %vm306 = vweird.f32 %v267
    %vm307 = vweird.f32 %v301
    %vm308 = vmor %vm306, %vm307
    %v309 = vsel %vm308, %v301, %v305
    %v310 = vand.u32 2147483647, %v267
    %vm311 = vcmp.eq.f32.partialorder %v310, 8.507059e+37
    %v312 = vand.u32 %v267, 2147483648
    %v313 = vor.u32 1.1754944e-38, %v312
    %v314 = vsel %vm311, %v313, %v309
    %v315 = vmul.f32 %v256, %v314
    %v316 = vrcp.pop %v270
    %v317 = vmul.f32 %v270, %v316
    %v318 = vsub.f32 1.0, %v317
    %v319 = vmul.f32 %v316, %v318
    %v320 = vadd.f32 %v316, %v319
    %vm321 = vweird.f32 %v270
    %vm322 = vweird.f32 %v316
    %vm323 = vmor %vm321, %vm322
    %v324 = vsel %vm323, %v316, %v320
    %v325 = vand.u32 2147483647, %v270
    %vm326 = vcmp.eq.f32.partialorder %v325, 8.507059e+37
    %v327 = vand.u32 %v270, 2147483648
    %v328 = vor.u32 1.1754944e-38, %v327
    %v329 = vsel %vm326, %v328, %v324
    %v330 = vmul.f32 %v258, %v329
    %331 = vrot.lane.b32.xlu0 %v104, 64
    %v332 = vpop.permute.xlu0 %331
    %v335 = vsel %vm123, %v285, 0
    %337 = vmatpush.msra.mxu0 0.0
    %338 = vmatpush.msra.mxu0 0.0
    %339 = vmatpush.msra.mxu0 0.0
    %340 = vmatpush.msra.mxu0 0.0
    %341 = vmatpush.msra.mxu0 0.0
    %342 = vmatpush.msra.mxu0 0.0
    %343 = vmatpush.msra.mxu0 0.0
    %344 = vmatpush.msra.mxu0 0.0
    %345 = vmatpush.msra.mxu0 0.0
    %346 = vmatpush.msra.mxu0 0.0
    %347 = vmatpush.msra.mxu0 0.0
    %348 = vmatpush.msra.mxu0 0.0
    %349 = vmatpush.msra.mxu0 0.0
    %350 = vmatpush.msra.mxu0 0.0
    %351 = vmatpush.msra.mxu0 0.0
    %352 = vmatpush.msra.mxu0 %v332
    %353 = vmatmul.f32.gmra.mxu0 %v335
    %v354 = vpop.f32.mrf.mxu0
    %v355 = vadd.f32 0.0, %v354
    %356 = vdwg.mxu0
    %357 = vrot.lane.b32.xlu0 %v107, 64
    %v358 = vpop.permute.xlu0 %357
    %v361 = vsel %vm123, %v300, 0
    %363 = vmatpush.msra.mxu0 0.0
    %364 = vmatpush.msra.mxu0 0.0
    %365 = vmatpush.msra.mxu0 0.0
    %366 = vmatpush.msra.mxu0 0.0
    %367 = vmatpush.msra.mxu0 0.0
    %368 = vmatpush.msra.mxu0 0.0
    %369 = vmatpush.msra.mxu0 0.0
    %370 = vmatpush.msra.mxu0 0.0
    %371 = vmatpush.msra.mxu0 0.0
    %372 = vmatpush.msra.mxu0 0.0
    %373 = vmatpush.msra.mxu0 0.0
    %374 = vmatpush.msra.mxu0 0.0
    %375 = vmatpush.msra.mxu0 0.0
    %376 = vmatpush.msra.mxu0 0.0
    %377 = vmatpush.msra.mxu0 0.0
    %378 = vmatpush.msra.mxu0 %v358
    %379 = vmatmul.f32.gmra.mxu0 %v361
    %v380 = vpop.f32.mrf.mxu0
    %v381 = vadd.f32 0.0, %v380
    %382 = vdwg.mxu0
    %383 = vrot.lane.b32.xlu0 %v110, 64
    %v384 = vpop.permute.xlu0 %383
    %v387 = vsel %vm123, %v315, 0
    %389 = vmatpush.msra.mxu0 0.0
    %390 = vmatpush.msra.mxu0 0.0
    %391 = vmatpush.msra.mxu0 0.0
    %392 = vmatpush.msra.mxu0 0.0
    %393 = vmatpush.msra.mxu0 0.0
    %394 = vmatpush.msra.mxu0 0.0
    %395 = vmatpush.msra.mxu0 0.0
    %396 = vmatpush.msra.mxu0 0.0
    %397 = vmatpush.msra.mxu0 0.0
    %398 = vmatpush.msra.mxu0 0.0
    %399 = vmatpush.msra.mxu0 0.0
    %400 = vmatpush.msra.mxu0 0.0
    %401 = vmatpush.msra.mxu0 0.0
    %402 = vmatpush.msra.mxu0 0.0
    %403 = vmatpush.msra.mxu0 0.0
    %404 = vmatpush.msra.mxu0 %v384
    %405 = vmatmul.f32.gmra.mxu0 %v387
    %v406 = vpop.f32.mrf.mxu0
    %v407 = vadd.f32 0.0, %v406
    %408 = vdwg.mxu0
    %409 = vrot.lane.b32.xlu0 %v113, 64
    %v410 = vpop.permute.xlu0 %409
    %v413 = vsel %vm123, %v330, 0
    %415 = vmatpush.msra.mxu0 0.0
    %416 = vmatpush.msra.mxu0 0.0
    %417 = vmatpush.msra.mxu0 0.0
    %418 = vmatpush.msra.mxu0 0.0
    %419 = vmatpush.msra.mxu0 0.0
    %420 = vmatpush.msra.mxu0 0.0
    %421 = vmatpush.msra.mxu0 0.0
    %422 = vmatpush.msra.mxu0 0.0
    %423 = vmatpush.msra.mxu0 0.0
    %424 = vmatpush.msra.mxu0 0.0
    %425 = vmatpush.msra.mxu0 0.0
    %426 = vmatpush.msra.mxu0 0.0
    %427 = vmatpush.msra.mxu0 0.0
    %428 = vmatpush.msra.mxu0 0.0
    %429 = vmatpush.msra.mxu0 0.0
    %430 = vmatpush.msra.mxu0 %v410
    %431 = vmatmul.f32.gmra.mxu0 %v413
    %v432 = vpop.f32.mrf.mxu0
    %v433 = vadd.f32 0.0, %v432
    %434 = vdwg.mxu0
    %435 = vrot.lane.b32.xlu0 %v104, 120
    %v436 = vpop.permute.xlu0 %435
    %437 = vrot.lane.b32.xlu0 %v104, 88
    %v438 = vpop.permute.xlu0 %437
    %v439 = vsel %vm123, %v436, 0
    %v441 = vsel %vm123, %v438, 0
    %443 = vmatpush.xpose.msra.mxu0 0.0
    %444 = vmatpush.xpose.msra.mxu0 0.0
    %445 = vmatpush.xpose.msra.mxu0 0.0
    %446 = vmatpush.xpose.msra.mxu0 0.0
    %447 = vmatpush.xpose.msra.mxu0 0.0
    %448 = vmatpush.xpose.msra.mxu0 0.0
    %449 = vmatpush.xpose.msra.mxu0 0.0
    %450 = vmatpush.xpose.msra.mxu0 0.0
    %451 = vmatpush.xpose.msra.mxu0 0.0
    %452 = vmatpush.xpose.msra.mxu0 0.0
    %453 = vmatpush.xpose.msra.mxu0 0.0
    %454 = vmatpush.xpose.msra.mxu0 0.0
    %455 = vmatpush.xpose.msra.mxu0 0.0
    %456 = vmatpush.xpose.msra.mxu0 0.0
    %457 = vmatpush.xpose.msra.mxu0 0.0
    %458 = vmatpush.xpose.msra.mxu0 %v441
    %459 = vmatmul.f32.gmra.mxu0 %v439
    %v460 = vpop.f32.mrf.mxu0
    %v461 = vadd.f32 0.0, %v460
    %462 = vdwg.mxu0
    %463 = vrot.lane.b32.xlu0 %v107, 120
    %v464 = vpop.permute.xlu0 %463
    %465 = vrot.lane.b32.xlu0 %v107, 88
    %v466 = vpop.permute.xlu0 %465
    %v467 = vsel %vm123, %v464, 0
    %v469 = vsel %vm123, %v466, 0
    %471 = vmatpush.xpose.msra.mxu0 0.0
    %472 = vmatpush.xpose.msra.mxu0 0.0
    %473 = vmatpush.xpose.msra.mxu0 0.0
    %474 = vmatpush.xpose.msra.mxu0 0.0
    %475 = vmatpush.xpose.msra.mxu0 0.0
    %476 = vmatpush.xpose.msra.mxu0 0.0
    %477 = vmatpush.xpose.msra.mxu0 0.0
    %478 = vmatpush.xpose.msra.mxu0 0.0
    %479 = vmatpush.xpose.msra.mxu0 0.0
    %480 = vmatpush.xpose.msra.mxu0 0.0
    %481 = vmatpush.xpose.msra.mxu0 0.0
    %482 = vmatpush.xpose.msra.mxu0 0.0
    %483 = vmatpush.xpose.msra.mxu0 0.0
    %484 = vmatpush.xpose.msra.mxu0 0.0
    %485 = vmatpush.xpose.msra.mxu0 0.0
    %486 = vmatpush.xpose.msra.mxu0 %v469
    %487 = vmatmul.f32.gmra.mxu0 %v467
    %v488 = vpop.f32.mrf.mxu0
    %v489 = vadd.f32 0.0, %v488
    %490 = vdwg.mxu0
    %491 = vrot.lane.b32.xlu0 %v110, 120
    %v492 = vpop.permute.xlu0 %491
    %493 = vrot.lane.b32.xlu0 %v110, 88
    %v494 = vpop.permute.xlu0 %493
    %v495 = vsel %vm123, %v492, 0
    %v497 = vsel %vm123, %v494, 0
    %499 = vmatpush.xpose.msra.mxu0 0.0
    %500 = vmatpush.xpose.msra.mxu0 0.0
    %501 = vmatpush.xpose.msra.mxu0 0.0
    %502 = vmatpush.xpose.msra.mxu0 0.0
    %503 = vmatpush.xpose.msra.mxu0 0.0
    %504 = vmatpush.xpose.msra.mxu0 0.0
    %505 = vmatpush.xpose.msra.mxu0 0.0
    %506 = vmatpush.xpose.msra.mxu0 0.0
    %507 = vmatpush.xpose.msra.mxu0 0.0
    %508 = vmatpush.xpose.msra.mxu0 0.0
    %509 = vmatpush.xpose.msra.mxu0 0.0
    %510 = vmatpush.xpose.msra.mxu0 0.0
    %511 = vmatpush.xpose.msra.mxu0 0.0
    %512 = vmatpush.xpose.msra.mxu0 0.0
    %513 = vmatpush.xpose.msra.mxu0 0.0
    %514 = vmatpush.xpose.msra.mxu0 %v497
    %515 = vmatmul.f32.gmra.mxu0 %v495
    %v516 = vpop.f32.mrf.mxu0
    %v517 = vadd.f32 0.0, %v516
    %518 = vdwg.mxu0
    %519 = vrot.lane.b32.xlu0 %v113, 120
    %v520 = vpop.permute.xlu0 %519
    %521 = vrot.lane.b32.xlu0 %v113, 88
    %v522 = vpop.permute.xlu0 %521
    %v523 = vsel %vm123, %v520, 0
    %v525 = vsel %vm123, %v522, 0
    %527 = vmatpush.xpose.msra.mxu0 0.0
    %528 = vmatpush.xpose.msra.mxu0 0.0
    %529 = vmatpush.xpose.msra.mxu0 0.0
    %530 = vmatpush.xpose.msra.mxu0 0.0
    %531 = vmatpush.xpose.msra.mxu0 0.0
    %532 = vmatpush.xpose.msra.mxu0 0.0
    %533 = vmatpush.xpose.msra.mxu0 0.0
    %534 = vmatpush.xpose.msra.mxu0 0.0
    %535 = vmatpush.xpose.msra.mxu0 0.0
    %536 = vmatpush.xpose.msra.mxu0 0.0
    %537 = vmatpush.xpose.msra.mxu0 0.0
    %538 = vmatpush.xpose.msra.mxu0 0.0
    %539 = vmatpush.xpose.msra.mxu0 0.0
    %540 = vmatpush.xpose.msra.mxu0 0.0
    %541 = vmatpush.xpose.msra.mxu0 0.0
    %542 = vmatpush.xpose.msra.mxu0 %v525
    %543 = vmatmul.f32.gmra.mxu0 %v523
    %v544 = vpop.f32.mrf.mxu0
    %v545 = vadd.f32 0.0, %v544
    %546 = vdwg.mxu0
    %v547 = vsel %vm230, %v461, -inf
    %v548 = vsel %vm230, %v489, -inf
    %v549 = vsel %vm230, %v517, -inf
    %v550 = vsel %vm230, %v545, -inf
    %v551 = vsel %vm123, %v547, -inf
    %552 = vmax.xlane.f32.xlu0 %v551
    %v553 = vpop.xlane.xlu0 %552
    %v554 = vsel %vm123, %v548, -inf
    %555 = vmax.xlane.f32.xlu0 %v554
    %v556 = vpop.xlane.xlu0 %555
    %v557 = vsel %vm123, %v549, -inf
    %558 = vmax.xlane.f32.xlu0 %v557
    %v559 = vpop.xlane.xlu0 %558
    %v560 = vsel %vm123, %v550, -inf
    %561 = vmax.xlane.f32.xlu0 %v560
    %v562 = vpop.xlane.xlu0 %561
    %v563 = vsub.f32 %v547, %v553
    %v564 = vsub.f32 %v548, %v556
    %v565 = vsub.f32 %v549, %v559
    %v566 = vsub.f32 %v550, %v562
    %v567 = vmul.f32 %v563, 1.442695
    %v568 = vpow.pop %v567
    %v569 = vmul.f32 %v564, 1.442695
    %v570 = vpow.pop %v569
    %v571 = vmul.f32 %v565, 1.442695
    %v572 = vpow.pop %v571
    %v573 = vmul.f32 %v566, 1.442695
    %v574 = vpow.pop %v573
    %v575 = vsel %vm123, %v568, 0.0
    %576 = vadd.xlane.f32.xlu0 %v575
    %v577 = vpop.xlane.xlu0 %576
    %v578 = vsel %vm123, %v570, 0.0
    %579 = vadd.xlane.f32.xlu0 %v578
    %v580 = vpop.xlane.xlu0 %579
    %v581 = vsel %vm123, %v572, 0.0
    %582 = vadd.xlane.f32.xlu0 %v581
    %v583 = vpop.xlane.xlu0 %582
    %v584 = vsel %vm123, %v574, 0.0
    %585 = vadd.xlane.f32.xlu0 %v584
    %v586 = vpop.xlane.xlu0 %585
    %v587 = vrcp.pop %v577
    %v588 = vmul.f32 %v577, %v587
    %v589 = vsub.f32 1.0, %v588
    %v590 = vmul.f32 %v587, %v589
    %v591 = vadd.f32 %v587, %v590
    %vm592 = vweird.f32 %v577
    %vm593 = vweird.f32 %v587
    %vm594 = vmor %vm592, %vm593
    %v595 = vsel %vm594, %v587, %v591
    %v596 = vand.u32 2147483647, %v577
    %vm597 = vcmp.eq.f32.partialorder %v596, 8.507059e+37
    %v598 = vand.u32 %v577, 2147483648
    %v599 = vor.u32 1.1754944e-38, %v598
    %v600 = vsel %vm597, %v599, %v595
    %v601 = vmul.f32 %v568, %v600
    %v602 = vrcp.pop %v580
    %v603 = vmul.f32 %v580, %v602
    %v604 = vsub.f32 1.0, %v603
    %v605 = vmul.f32 %v602, %v604
    %v606 = vadd.f32 %v602, %v605
    %vm607 = vweird.f32 %v580
    %vm608 = vweird.f32 %v602
    %vm609 = vmor %vm607, %vm608
    %v610 = vsel %vm609, %v602, %v606
    %v611 = vand.u32 2147483647, %v580
    %vm612 = vcmp.eq.f32.partialorder %v611, 8.507059e+37
    %v613 = vand.u32 %v580, 2147483648
    %v614 = vor.u32 1.1754944e-38, %v613
    %v615 = vsel %vm612, %v614, %v610
    %v616 = vmul.f32 %v570, %v615
    %v617 = vrcp.pop %v583
    %v618 = vmul.f32 %v583, %v617
    %v619 = vsub.f32 1.0, %v618
    %v620 = vmul.f32 %v617, %v619
    %v621 = vadd.f32 %v617, %v620
    %vm622 = vweird.f32 %v583
    %vm623 = vweird.f32 %v617
    %vm624 = vmor %vm622, %vm623
    %v625 = vsel %vm624, %v617, %v621
    %v626 = vand.u32 2147483647, %v583
    %vm627 = vcmp.eq.f32.partialorder %v626, 8.507059e+37
    %v628 = vand.u32 %v583, 2147483648
    %v629 = vor.u32 1.1754944e-38, %v628
    %v630 = vsel %vm627, %v629, %v625
    %v631 = vmul.f32 %v572, %v630
    %v632 = vrcp.pop %v586
    %v633 = vmul.f32 %v586, %v632
    %v634 = vsub.f32 1.0, %v633
    %v635 = vmul.f32 %v632, %v634
    %v636 = vadd.f32 %v632, %v635
    %vm637 = vweird.f32 %v586
    %vm638 = vweird.f32 %v632
    %vm639 = vmor %vm637, %vm638
    %v640 = vsel %vm639, %v632, %v636
    %v641 = vand.u32 2147483647, %v586
    %vm642 = vcmp.eq.f32.partialorder %v641, 8.507059e+37
    %v643 = vand.u32 %v586, 2147483648
    %v644 = vor.u32 1.1754944e-38, %v643
    %v645 = vsel %vm642, %v644, %v640
    %v646 = vmul.f32 %v574, %v645
    %647 = vrot.lane.b32.xlu0 %v104, 56
    %v648 = vpop.permute.xlu0 %647
    %v651 = vsel %vm123, %v601, 0
    %653 = vmatpush.msra.mxu0 0.0
    %654 = vmatpush.msra.mxu0 0.0
    %655 = vmatpush.msra.mxu0 0.0
    %656 = vmatpush.msra.mxu0 0.0
    %657 = vmatpush.msra.mxu0 0.0
    %658 = vmatpush.msra.mxu0 0.0
    %659 = vmatpush.msra.mxu0 0.0
    %660 = vmatpush.msra.mxu0 0.0
    %661 = vmatpush.msra.mxu0 0.0
    %662 = vmatpush.msra.mxu0 0.0
    %663 = vmatpush.msra.mxu0 0.0
    %664 = vmatpush.msra.mxu0 0.0
    %665 = vmatpush.msra.mxu0 0.0
    %666 = vmatpush.msra.mxu0 0.0
    %667 = vmatpush.msra.mxu0 0.0
    %668 = vmatpush.msra.mxu0 %v648
    %669 = vmatmul.f32.gmra.mxu0 %v651
    %v670 = vpop.f32.mrf.mxu0
    %v671 = vadd.f32 0.0, %v670
    %672 = vdwg.mxu0
    %673 = vrot.lane.b32.xlu0 %v107, 56
    %v674 = vpop.permute.xlu0 %673
    %v677 = vsel %vm123, %v616, 0
    %679 = vmatpush.msra.mxu0 0.0
    %680 = vmatpush.msra.mxu0 0.0
    %681 = vmatpush.msra.mxu0 0.0
    %682 = vmatpush.msra.mxu0 0.0
    %683 = vmatpush.msra.mxu0 0.0
    %684 = vmatpush.msra.mxu0 0.0
    %685 = vmatpush.msra.mxu0 0.0
    %686 = vmatpush.msra.mxu0 0.0
    %687 = vmatpush.msra.mxu0 0.0
    %688 = vmatpush.msra.mxu0 0.0
    %689 = vmatpush.msra.mxu0 0.0
    %690 = vmatpush.msra.mxu0 0.0
    %691 = vmatpush.msra.mxu0 0.0
    %692 = vmatpush.msra.mxu0 0.0
    %693 = vmatpush.msra.mxu0 0.0
    %694 = vmatpush.msra.mxu0 %v674
    %695 = vmatmul.f32.gmra.mxu0 %v677
    %v696 = vpop.f32.mrf.mxu0
    %v697 = vadd.f32 0.0, %v696
    %698 = vdwg.mxu0
    %699 = vrot.lane.b32.xlu0 %v110, 56
    %v700 = vpop.permute.xlu0 %699
    %v703 = vsel %vm123, %v631, 0
    %705 = vmatpush.msra.mxu0 0.0
    %706 = vmatpush.msra.mxu0 0.0
    %707 = vmatpush.msra.mxu0 0.0
    %708 = vmatpush.msra.mxu0 0.0
    %709 = vmatpush.msra.mxu0 0.0
    %710 = vmatpush.msra.mxu0 0.0
    %711 = vmatpush.msra.mxu0 0.0
    %712 = vmatpush.msra.mxu0 0.0
    %713 = vmatpush.msra.mxu0 0.0
    %714 = vmatpush.msra.mxu0 0.0
    %715 = vmatpush.msra.mxu0 0.0
    %716 = vmatpush.msra.mxu0 0.0
    %717 = vmatpush.msra.mxu0 0.0
    %718 = vmatpush.msra.mxu0 0.0
    %719 = vmatpush.msra.mxu0 0.0
    %720 = vmatpush.msra.mxu0 %v700
    %721 = vmatmul.f32.gmra.mxu0 %v703
    %v722 = vpop.f32.mrf.mxu0
    %v723 = vadd.f32 0.0, %v722
    %724 = vdwg.mxu0
    %725 = vrot.lane.b32.xlu0 %v113, 56
    %v726 = vpop.permute.xlu0 %725
    %v729 = vsel %vm123, %v646, 0
    %731 = vmatpush.msra.mxu0 0.0
    %732 = vmatpush.msra.mxu0 0.0
    %733 = vmatpush.msra.mxu0 0.0
    %734 = vmatpush.msra.mxu0 0.0
    %735 = vmatpush.msra.mxu0 0.0
    %736 = vmatpush.msra.mxu0 0.0
    %737 = vmatpush.msra.mxu0 0.0
    %738 = vmatpush.msra.mxu0 0.0
    %739 = vmatpush.msra.mxu0 0.0
    %740 = vmatpush.msra.mxu0 0.0
    %741 = vmatpush.msra.mxu0 0.0
    %742 = vmatpush.msra.mxu0 0.0
    %743 = vmatpush.msra.mxu0 0.0
    %744 = vmatpush.msra.mxu0 0.0
    %745 = vmatpush.msra.mxu0 0.0
    %746 = vmatpush.msra.mxu0 %v726
    %747 = vmatmul.f32.gmra.mxu0 %v729
    %v748 = vpop.f32.mrf.mxu0
    %v749 = vadd.f32 0.0, %v748
    %750 = vdwg.mxu0
    %751 = vrot.lane.b32.xlu0 %v104, 112
    %v752 = vpop.permute.xlu0 %751
    %753 = vrot.lane.b32.xlu0 %v104, 80
    %v754 = vpop.permute.xlu0 %753
    %v755 = vsel %vm123, %v752, 0
    %v757 = vsel %vm123, %v754, 0
    %759 = vmatpush.xpose.msra.mxu0 0.0
    %760 = vmatpush.xpose.msra.mxu0 0.0
    %761 = vmatpush.xpose.msra.mxu0 0.0
    %762 = vmatpush.xpose.msra.mxu0 0.0
    %763 = vmatpush.xpose.msra.mxu0 0.0
    %764 = vmatpush.xpose.msra.mxu0 0.0
    %765 = vmatpush.xpose.msra.mxu0 0.0
    %766 = vmatpush.xpose.msra.mxu0 0.0
    %767 = vmatpush.xpose.msra.mxu0 0.0
    %768 = vmatpush.xpose.msra.mxu0 0.0
    %769 = vmatpush.xpose.msra.mxu0 0.0
    %770 = vmatpush.xpose.msra.mxu0 0.0
    %771 = vmatpush.xpose.msra.mxu0 0.0
    %772 = vmatpush.xpose.msra.mxu0 0.0
    %773 = vmatpush.xpose.msra.mxu0 0.0
    %774 = vmatpush.xpose.msra.mxu0 %v757
    %775 = vmatmul.f32.gmra.mxu0 %v755
    %v776 = vpop.f32.mrf.mxu0
    %v777 = vadd.f32 0.0, %v776
    %778 = vdwg.mxu0
    %779 = vrot.lane.b32.xlu0 %v107, 112
    %v780 = vpop.permute.xlu0 %779
    %781 = vrot.lane.b32.xlu0 %v107, 80
    %v782 = vpop.permute.xlu0 %781
    %v783 = vsel %vm123, %v780, 0
    %v785 = vsel %vm123, %v782, 0
    %787 = vmatpush.xpose.msra.mxu0 0.0
    %788 = vmatpush.xpose.msra.mxu0 0.0
    %789 = vmatpush.xpose.msra.mxu0 0.0
    %790 = vmatpush.xpose.msra.mxu0 0.0
    %791 = vmatpush.xpose.msra.mxu0 0.0
    %792 = vmatpush.xpose.msra.mxu0 0.0
    %793 = vmatpush.xpose.msra.mxu0 0.0
    %794 = vmatpush.xpose.msra.mxu0 0.0
    %795 = vmatpush.xpose.msra.mxu0 0.0
    %796 = vmatpush.xpose.msra.mxu0 0.0
    %797 = vmatpush.xpose.msra.mxu0 0.0
    %798 = vmatpush.xpose.msra.mxu0 0.0
    %799 = vmatpush.xpose.msra.mxu0 0.0
    %800 = vmatpush.xpose.msra.mxu0 0.0
    %801 = vmatpush.xpose.msra.mxu0 0.0
    %802 = vmatpush.xpose.msra.mxu0 %v785
    %803 = vmatmul.f32.gmra.mxu0 %v783
    %v804 = vpop.f32.mrf.mxu0
    %v805 = vadd.f32 0.0, %v804
    %806 = vdwg.mxu0
    %807 = vrot.lane.b32.xlu0 %v110, 112
    %v808 = vpop.permute.xlu0 %807
    %809 = vrot.lane.b32.xlu0 %v110, 80
    %v810 = vpop.permute.xlu0 %809
    %v811 = vsel %vm123, %v808, 0
    %v813 = vsel %vm123, %v810, 0
    %815 = vmatpush.xpose.msra.mxu0 0.0
    %816 = vmatpush.xpose.msra.mxu0 0.0
    %817 = vmatpush.xpose.msra.mxu0 0.0
    %818 = vmatpush.xpose.msra.mxu0 0.0
    %819 = vmatpush.xpose.msra.mxu0 0.0
    %820 = vmatpush.xpose.msra.mxu0 0.0
    %821 = vmatpush.xpose.msra.mxu0 0.0
    %822 = vmatpush.xpose.msra.mxu0 0.0
    %823 = vmatpush.xpose.msra.mxu0 0.0
    %824 = vmatpush.xpose.msra.mxu0 0.0
    %825 = vmatpush.xpose.msra.mxu0 0.0
    %826 = vmatpush.xpose.msra.mxu0 0.0
    %827 = vmatpush.xpose.msra.mxu0 0.0
    %828 = vmatpush.xpose.msra.mxu0 0.0
    %829 = vmatpush.xpose.msra.mxu0 0.0
    %830 = vmatpush.xpose.msra.mxu0 %v813
    %831 = vmatmul.f32.gmra.mxu0 %v811
    %v832 = vpop.f32.mrf.mxu0
    %v833 = vadd.f32 0.0, %v832
    %834 = vdwg.mxu0
    %835 = vrot.lane.b32.xlu0 %v113, 112
    %v836 = vpop.permute.xlu0 %835
    %837 = vrot.lane.b32.xlu0 %v113, 80
    %v838 = vpop.permute.xlu0 %837
    %v839 = vsel %vm123, %v836, 0
    %v841 = vsel %vm123, %v838, 0
    %843 = vmatpush.xpose.msra.mxu0 0.0
    %844 = vmatpush.xpose.msra.mxu0 0.0
    %845 = vmatpush.xpose.msra.mxu0 0.0
    %846 = vmatpush.xpose.msra.mxu0 0.0
    %847 = vmatpush.xpose.msra.mxu0 0.0
    %848 = vmatpush.xpose.msra.mxu0 0.0
    %849 = vmatpush.xpose.msra.mxu0 0.0
    %850 = vmatpush.xpose.msra.mxu0 0.0
    %851 = vmatpush.xpose.msra.mxu0 0.0
    %852 = vmatpush.xpose.msra.mxu0 0.0
    %853 = vmatpush.xpose.msra.mxu0 0.0
    %854 = vmatpush.xpose.msra.mxu0 0.0
    %855 = vmatpush.xpose.msra.mxu0 0.0
    %856 = vmatpush.xpose.msra.mxu0 0.0
    %857 = vmatpush.xpose.msra.mxu0 0.0
    %858 = vmatpush.xpose.msra.mxu0 %v841
    %859 = vmatmul.f32.gmra.mxu0 %v839
    %v860 = vpop.f32.mrf.mxu0
    %v861 = vadd.f32 0.0, %v860
    %862 = vdwg.mxu0
    %v863 = vsel %vm230, %v777, -inf
    %v864 = vsel %vm230, %v805, -inf
    %v865 = vsel %vm230, %v833, -inf
    %v866 = vsel %vm230, %v861, -inf
    %v867 = vsel %vm123, %v863, -inf
    %868 = vmax.xlane.f32.xlu0 %v867
    %v869 = vpop.xlane.xlu0 %868
    %v870 = vsel %vm123, %v864, -inf
    %871 = vmax.xlane.f32.xlu0 %v870
    %v872 = vpop.xlane.xlu0 %871
    %v873 = vsel %vm123, %v865, -inf
    %874 = vmax.xlane.f32.xlu0 %v873
    %v875 = vpop.xlane.xlu0 %874
    %v876 = vsel %vm123, %v866, -inf
    %877 = vmax.xlane.f32.xlu0 %v876
    %v878 = vpop.xlane.xlu0 %877
    %v879 = vsub.f32 %v863, %v869
    %v880 = vsub.f32 %v864, %v872
    %v881 = vsub.f32 %v865, %v875
    %v882 = vsub.f32 %v866, %v878
    %v883 = vmul.f32 %v879, 1.442695
    %v884 = vpow.pop %v883
    %v885 = vmul.f32 %v880, 1.442695
    %v886 = vpow.pop %v885
    %v887 = vmul.f32 %v881, 1.442695
    %v888 = vpow.pop %v887
    %v889 = vmul.f32 %v882, 1.442695
    %v890 = vpow.pop %v889
    %v891 = vsel %vm123, %v884, 0.0
    %892 = vadd.xlane.f32.xlu0 %v891
    %v893 = vpop.xlane.xlu0 %892
    %v894 = vsel %vm123, %v886, 0.0
    %895 = vadd.xlane.f32.xlu0 %v894
    %v896 = vpop.xlane.xlu0 %895
    %v897 = vsel %vm123, %v888, 0.0
    %898 = vadd.xlane.f32.xlu0 %v897
    %v899 = vpop.xlane.xlu0 %898
    %v900 = vsel %vm123, %v890, 0.0
    %901 = vadd.xlane.f32.xlu0 %v900
    %v902 = vpop.xlane.xlu0 %901
    %v903 = vrcp.pop %v893
    %v904 = vmul.f32 %v893, %v903
    %v905 = vsub.f32 1.0, %v904
    %v906 = vmul.f32 %v903, %v905
    %v907 = vadd.f32 %v903, %v906
    %vm908 = vweird.f32 %v893
    %vm909 = vweird.f32 %v903
    %vm910 = vmor %vm908, %vm909
    %v911 = vsel %vm910, %v903, %v907
    %v912 = vand.u32 2147483647, %v893
    %vm913 = vcmp.eq.f32.partialorder %v912, 8.507059e+37
    %v914 = vand.u32 %v893, 2147483648
    %v915 = vor.u32 1.1754944e-38, %v914
    %v916 = vsel %vm913, %v915, %v911
    %v917 = vmul.f32 %v884, %v916
    %v918 = vrcp.pop %v896
    %v919 = vmul.f32 %v896, %v918
    %v920 = vsub.f32 1.0, %v919
    %v921 = vmul.f32 %v918, %v920
    %v922 = vadd.f32 %v918, %v921
    %vm923 = vweird.f32 %v896
    %vm924 = vweird.f32 %v918
    %vm925 = vmor %vm923, %vm924
    %v926 = vsel %vm925, %v918, %v922
    %v927 = vand.u32 2147483647, %v896
    %vm928 = vcmp.eq.f32.partialorder %v927, 8.507059e+37
    %v929 = vand.u32 %v896, 2147483648
    %v930 = vor.u32 1.1754944e-38, %v929
    %v931 = vsel %vm928, %v930, %v926
    %v932 = vmul.f32 %v886, %v931
    %v933 = vrcp.pop %v899
    %v934 = vmul.f32 %v899, %v933
    %v935 = vsub.f32 1.0, %v934
    %v936 = vmul.f32 %v933, %v935
    %v937 = vadd.f32 %v933, %v936
    %vm938 = vweird.f32 %v899
    %vm939 = vweird.f32 %v933
    %vm940 = vmor %vm938, %vm939
    %v941 = vsel %vm940, %v933, %v937
    %v942 = vand.u32 2147483647, %v899
    %vm943 = vcmp.eq.f32.partialorder %v942, 8.507059e+37
    %v944 = vand.u32 %v899, 2147483648
    %v945 = vor.u32 1.1754944e-38, %v944
    %v946 = vsel %vm943, %v945, %v941
    %v947 = vmul.f32 %v888, %v946
    %v948 = vrcp.pop %v902
    %v949 = vmul.f32 %v902, %v948
    %v950 = vsub.f32 1.0, %v949
    %v951 = vmul.f32 %v948, %v950
    %v952 = vadd.f32 %v948, %v951
    %vm953 = vweird.f32 %v902
    %vm954 = vweird.f32 %v948
    %vm955 = vmor %vm953, %vm954
    %v956 = vsel %vm955, %v948, %v952
    %v957 = vand.u32 2147483647, %v902
    %vm958 = vcmp.eq.f32.partialorder %v957, 8.507059e+37
    %v959 = vand.u32 %v902, 2147483648
    %v960 = vor.u32 1.1754944e-38, %v959
    %v961 = vsel %vm958, %v960, %v956
    %v962 = vmul.f32 %v890, %v961
    %963 = vrot.lane.b32.xlu0 %v104, 48
    %v964 = vpop.permute.xlu0 %963
    %v967 = vsel %vm123, %v917, 0
    %969 = vmatpush.msra.mxu0 0.0
    %970 = vmatpush.msra.mxu0 0.0
    %971 = vmatpush.msra.mxu0 0.0
    %972 = vmatpush.msra.mxu0 0.0
    %973 = vmatpush.msra.mxu0 0.0
    %974 = vmatpush.msra.mxu0 0.0
    %975 = vmatpush.msra.mxu0 0.0
    %976 = vmatpush.msra.mxu0 0.0
    %977 = vmatpush.msra.mxu0 0.0
    %978 = vmatpush.msra.mxu0 0.0
    %979 = vmatpush.msra.mxu0 0.0
    %980 = vmatpush.msra.mxu0 0.0
    %981 = vmatpush.msra.mxu0 0.0
    %982 = vmatpush.msra.mxu0 0.0
    %983 = vmatpush.msra.mxu0 0.0
    %984 = vmatpush.msra.mxu0 %v964
    %985 = vmatmul.f32.gmra.mxu0 %v967
    %v986 = vpop.f32.mrf.mxu0
    %v987 = vadd.f32 0.0, %v986
    %988 = vdwg.mxu0
    %989 = vrot.lane.b32.xlu0 %v107, 48
    %v990 = vpop.permute.xlu0 %989
    %v993 = vsel %vm123, %v932, 0
    %995 = vmatpush.msra.mxu0 0.0
    %996 = vmatpush.msra.mxu0 0.0
    %997 = vmatpush.msra.mxu0 0.0
    %998 = vmatpush.msra.mxu0 0.0
    %999 = vmatpush.msra.mxu0 0.0
    %1000 = vmatpush.msra.mxu0 0.0
    %1001 = vmatpush.msra.mxu0 0.0
    %1002 = vmatpush.msra.mxu0 0.0
    %1003 = vmatpush.msra.mxu0 0.0
    %1004 = vmatpush.msra.mxu0 0.0
    %1005 = vmatpush.msra.mxu0 0.0
    %1006 = vmatpush.msra.mxu0 0.0
    %1007 = vmatpush.msra.mxu0 0.0
    %1008 = vmatpush.msra.mxu0 0.0
    %1009 = vmatpush.msra.mxu0 0.0
    %1010 = vmatpush.msra.mxu0 %v990
    %1011 = vmatmul.f32.gmra.mxu0 %v993
    %v1012 = vpop.f32.mrf.mxu0
    %v1013 = vadd.f32 0.0, %v1012
    %1014 = vdwg.mxu0
    %1015 = vrot.lane.b32.xlu0 %v110, 48
    %v1016 = vpop.permute.xlu0 %1015
    %v1019 = vsel %vm123, %v947, 0
    %1021 = vmatpush.msra.mxu0 0.0
    %1022 = vmatpush.msra.mxu0 0.0
    %1023 = vmatpush.msra.mxu0 0.0
    %1024 = vmatpush.msra.mxu0 0.0
    %1025 = vmatpush.msra.mxu0 0.0
    %1026 = vmatpush.msra.mxu0 0.0
    %1027 = vmatpush.msra.mxu0 0.0
    %1028 = vmatpush.msra.mxu0 0.0
    %1029 = vmatpush.msra.mxu0 0.0
    %1030 = vmatpush.msra.mxu0 0.0
    %1031 = vmatpush.msra.mxu0 0.0
    %1032 = vmatpush.msra.mxu0 0.0
    %1033 = vmatpush.msra.mxu0 0.0
    %1034 = vmatpush.msra.mxu0 0.0
    %1035 = vmatpush.msra.mxu0 0.0
    %1036 = vmatpush.msra.mxu0 %v1016
    %1037 = vmatmul.f32.gmra.mxu0 %v1019
    %v1038 = vpop.f32.mrf.mxu0
    %v1039 = vadd.f32 0.0, %v1038
    %1040 = vdwg.mxu0
    %1041 = vrot.lane.b32.xlu0 %v113, 48
    %v1042 = vpop.permute.xlu0 %1041
    %v1045 = vsel %vm123, %v962, 0
    %1047 = vmatpush.msra.mxu0 0.0
    %1048 = vmatpush.msra.mxu0 0.0
    %1049 = vmatpush.msra.mxu0 0.0
    %1050 = vmatpush.msra.mxu0 0.0
    %1051 = vmatpush.msra.mxu0 0.0
    %1052 = vmatpush.msra.mxu0 0.0
    %1053 = vmatpush.msra.mxu0 0.0
    %1054 = vmatpush.msra.mxu0 0.0
    %1055 = vmatpush.msra.mxu0 0.0
    %1056 = vmatpush.msra.mxu0 0.0
    %1057 = vmatpush.msra.mxu0 0.0
    %1058 = vmatpush.msra.mxu0 0.0
    %1059 = vmatpush.msra.mxu0 0.0
    %1060 = vmatpush.msra.mxu0 0.0
    %1061 = vmatpush.msra.mxu0 0.0
    %1062 = vmatpush.msra.mxu0 %v1042
    %1063 = vmatmul.f32.gmra.mxu0 %v1045
    %v1064 = vpop.f32.mrf.mxu0
    %v1065 = vadd.f32 0.0, %v1064
    %1066 = vdwg.mxu0
    %1067 = vrot.lane.b32.xlu0 %v104, 104
    %v1068 = vpop.permute.xlu0 %1067
    %1069 = vrot.lane.b32.xlu0 %v104, 72
    %v1070 = vpop.permute.xlu0 %1069
    %v1071 = vsel %vm123, %v1068, 0
    %v1073 = vsel %vm123, %v1070, 0
    %1075 = vmatpush.xpose.msra.mxu0 0.0
    %1076 = vmatpush.xpose.msra.mxu0 0.0
    %1077 = vmatpush.xpose.msra.mxu0 0.0
    %1078 = vmatpush.xpose.msra.mxu0 0.0
    %1079 = vmatpush.xpose.msra.mxu0 0.0
    %1080 = vmatpush.xpose.msra.mxu0 0.0
    %1081 = vmatpush.xpose.msra.mxu0 0.0
    %1082 = vmatpush.xpose.msra.mxu0 0.0
    %1083 = vmatpush.xpose.msra.mxu0 0.0
    %1084 = vmatpush.xpose.msra.mxu0 0.0
    %1085 = vmatpush.xpose.msra.mxu0 0.0
    %1086 = vmatpush.xpose.msra.mxu0 0.0
    %1087 = vmatpush.xpose.msra.mxu0 0.0
    %1088 = vmatpush.xpose.msra.mxu0 0.0
    %1089 = vmatpush.xpose.msra.mxu0 0.0
    %1090 = vmatpush.xpose.msra.mxu0 %v1073
    %1091 = vmatmul.f32.gmra.mxu0 %v1071
    %v1092 = vpop.f32.mrf.mxu0
    %v1093 = vadd.f32 0.0, %v1092
    %1094 = vdwg.mxu0
    %1095 = vrot.lane.b32.xlu0 %v107, 104
    %v1096 = vpop.permute.xlu0 %1095
    %1097 = vrot.lane.b32.xlu0 %v107, 72
    %v1098 = vpop.permute.xlu0 %1097
    %v1099 = vsel %vm123, %v1096, 0
    %v1101 = vsel %vm123, %v1098, 0
    %1103 = vmatpush.xpose.msra.mxu0 0.0
    %1104 = vmatpush.xpose.msra.mxu0 0.0
    %1105 = vmatpush.xpose.msra.mxu0 0.0
    %1106 = vmatpush.xpose.msra.mxu0 0.0
    %1107 = vmatpush.xpose.msra.mxu0 0.0
    %1108 = vmatpush.xpose.msra.mxu0 0.0
    %1109 = vmatpush.xpose.msra.mxu0 0.0
    %1110 = vmatpush.xpose.msra.mxu0 0.0
    %1111 = vmatpush.xpose.msra.mxu0 0.0
    %1112 = vmatpush.xpose.msra.mxu0 0.0
    %1113 = vmatpush.xpose.msra.mxu0 0.0
    %1114 = vmatpush.xpose.msra.mxu0 0.0
    %1115 = vmatpush.xpose.msra.mxu0 0.0
    %1116 = vmatpush.xpose.msra.mxu0 0.0
    %1117 = vmatpush.xpose.msra.mxu0 0.0
    %1118 = vmatpush.xpose.msra.mxu0 %v1101
    %1119 = vmatmul.f32.gmra.mxu0 %v1099
    %v1120 = vpop.f32.mrf.mxu0
    %v1121 = vadd.f32 0.0, %v1120
    %1122 = vdwg.mxu0
    %1123 = vrot.lane.b32.xlu0 %v110, 104
    %v1124 = vpop.permute.xlu0 %1123
    %1125 = vrot.lane.b32.xlu0 %v110, 72
    %v1126 = vpop.permute.xlu0 %1125
    %v1127 = vsel %vm123, %v1124, 0
    %v1129 = vsel %vm123, %v1126, 0
    %1131 = vmatpush.xpose.msra.mxu0 0.0
    %1132 = vmatpush.xpose.msra.mxu0 0.0
    %1133 = vmatpush.xpose.msra.mxu0 0.0
    %1134 = vmatpush.xpose.msra.mxu0 0.0
    %1135 = vmatpush.xpose.msra.mxu0 0.0
    %1136 = vmatpush.xpose.msra.mxu0 0.0
    %1137 = vmatpush.xpose.msra.mxu0 0.0
    %1138 = vmatpush.xpose.msra.mxu0 0.0
    %1139 = vmatpush.xpose.msra.mxu0 0.0
    %1140 = vmatpush.xpose.msra.mxu0 0.0
    %1141 = vmatpush.xpose.msra.mxu0 0.0
    %1142 = vmatpush.xpose.msra.mxu0 0.0
    %1143 = vmatpush.xpose.msra.mxu0 0.0
    %1144 = vmatpush.xpose.msra.mxu0 0.0
    %1145 = vmatpush.xpose.msra.mxu0 0.0
    %1146 = vmatpush.xpose.msra.mxu0 %v1129
    %1147 = vmatmul.f32.gmra.mxu0 %v1127
    %v1148 = vpop.f32.mrf.mxu0
    %v1149 = vadd.f32 0.0, %v1148
    %1150 = vdwg.mxu0
    %1151 = vrot.lane.b32.xlu0 %v113, 104
    %v1152 = vpop.permute.xlu0 %1151
    %1153 = vrot.lane.b32.xlu0 %v113, 72
    %v1154 = vpop.permute.xlu0 %1153
    %v1155 = vsel %vm123, %v1152, 0
    %v1157 = vsel %vm123, %v1154, 0
    %1159 = vmatpush.xpose.msra.mxu0 0.0
    %1160 = vmatpush.xpose.msra.mxu0 0.0
    %1161 = vmatpush.xpose.msra.mxu0 0.0
    %1162 = vmatpush.xpose.msra.mxu0 0.0
    %1163 = vmatpush.xpose.msra.mxu0 0.0
    %1164 = vmatpush.xpose.msra.mxu0 0.0
    %1165 = vmatpush.xpose.msra.mxu0 0.0
    %1166 = vmatpush.xpose.msra.mxu0 0.0
    %1167 = vmatpush.xpose.msra.mxu0 0.0
    %1168 = vmatpush.xpose.msra.mxu0 0.0
    %1169 = vmatpush.xpose.msra.mxu0 0.0
    %1170 = vmatpush.xpose.msra.mxu0 0.0
    %1171 = vmatpush.xpose.msra.mxu0 0.0
    %1172 = vmatpush.xpose.msra.mxu0 0.0
    %1173 = vmatpush.xpose.msra.mxu0 0.0
    %1174 = vmatpush.xpose.msra.mxu0 %v1157
    %1175 = vmatmul.f32.gmra.mxu0 %v1155
    %v1176 = vpop.f32.mrf.mxu0
    %v1177 = vadd.f32 0.0, %v1176
    %1178 = vdwg.mxu0
    %v1179 = vsel %vm230, %v1093, -inf
    %v1180 = vsel %vm230, %v1121, -inf
    %v1181 = vsel %vm230, %v1149, -inf
    %v1182 = vsel %vm230, %v1177, -inf
    %v1183 = vsel %vm123, %v1179, -inf
    %1184 = vmax.xlane.f32.xlu0 %v1183
    %v1185 = vpop.xlane.xlu0 %1184
    %v1186 = vsel %vm123, %v1180, -inf
    %1187 = vmax.xlane.f32.xlu0 %v1186
    %v1188 = vpop.xlane.xlu0 %1187
    %v1189 = vsel %vm123, %v1181, -inf
    %1190 = vmax.xlane.f32.xlu0 %v1189
    %v1191 = vpop.xlane.xlu0 %1190
    %v1192 = vsel %vm123, %v1182, -inf
    %1193 = vmax.xlane.f32.xlu0 %v1192
    %v1194 = vpop.xlane.xlu0 %1193
    %v1195 = vsub.f32 %v1179, %v1185
    %v1196 = vsub.f32 %v1180, %v1188
    %v1197 = vsub.f32 %v1181, %v1191
    %v1198 = vsub.f32 %v1182, %v1194
    %v1199 = vmul.f32 %v1195, 1.442695
    %v1200 = vpow.pop %v1199
    %v1201 = vmul.f32 %v1196, 1.442695
    %v1202 = vpow.pop %v1201
    %v1203 = vmul.f32 %v1197, 1.442695
    %v1204 = vpow.pop %v1203
    %v1205 = vmul.f32 %v1198, 1.442695
    %v1206 = vpow.pop %v1205
    %v1207 = vsel %vm123, %v1200, 0.0
    %1208 = vadd.xlane.f32.xlu0 %v1207
    %v1209 = vpop.xlane.xlu0 %1208
    %v1210 = vsel %vm123, %v1202, 0.0
    %1211 = vadd.xlane.f32.xlu0 %v1210
    %v1212 = vpop.xlane.xlu0 %1211
    %v1213 = vsel %vm123, %v1204, 0.0
    %1214 = vadd.xlane.f32.xlu0 %v1213
    %v1215 = vpop.xlane.xlu0 %1214
    %v1216 = vsel %vm123, %v1206, 0.0
    %1217 = vadd.xlane.f32.xlu0 %v1216
    %v1218 = vpop.xlane.xlu0 %1217
    %v1219 = vrcp.pop %v1209
    %v1220 = vmul.f32 %v1209, %v1219
    %v1221 = vsub.f32 1.0, %v1220
    %v1222 = vmul.f32 %v1219, %v1221
    %v1223 = vadd.f32 %v1219, %v1222
    %vm1224 = vweird.f32 %v1209
    %vm1225 = vweird.f32 %v1219
    %vm1226 = vmor %vm1224, %vm1225
    %v1227 = vsel %vm1226, %v1219, %v1223
    %v1228 = vand.u32 2147483647, %v1209
    %vm1229 = vcmp.eq.f32.partialorder %v1228, 8.507059e+37
    %v1230 = vand.u32 %v1209, 2147483648
    %v1231 = vor.u32 1.1754944e-38, %v1230
    %v1232 = vsel %vm1229, %v1231, %v1227
    %v1233 = vmul.f32 %v1200, %v1232
    %v1234 = vrcp.pop %v1212
    %v1235 = vmul.f32 %v1212, %v1234
    %v1236 = vsub.f32 1.0, %v1235
    %v1237 = vmul.f32 %v1234, %v1236
    %v1238 = vadd.f32 %v1234, %v1237
    %vm1239 = vweird.f32 %v1212
    %vm1240 = vweird.f32 %v1234
    %vm1241 = vmor %vm1239, %vm1240
    %v1242 = vsel %vm1241, %v1234, %v1238
    %v1243 = vand.u32 2147483647, %v1212
    %vm1244 = vcmp.eq.f32.partialorder %v1243, 8.507059e+37
    %v1245 = vand.u32 %v1212, 2147483648
    %v1246 = vor.u32 1.1754944e-38, %v1245
    %v1247 = vsel %vm1244, %v1246, %v1242
    %v1248 = vmul.f32 %v1202, %v1247
    %v1249 = vrcp.pop %v1215
    %v1250 = vmul.f32 %v1215, %v1249
    %v1251 = vsub.f32 1.0, %v1250
    %v1252 = vmul.f32 %v1249, %v1251
    %v1253 = vadd.f32 %v1249, %v1252
    %vm1254 = vweird.f32 %v1215
    %vm1255 = vweird.f32 %v1249
    %vm1256 = vmor %vm1254, %vm1255
    %v1257 = vsel %vm1256, %v1249, %v1253
    %v1258 = vand.u32 2147483647, %v1215
    %vm1259 = vcmp.eq.f32.partialorder %v1258, 8.507059e+37
    %v1260 = vand.u32 %v1215, 2147483648
    %v1261 = vor.u32 1.1754944e-38, %v1260
    %v1262 = vsel %vm1259, %v1261, %v1257
    %v1263 = vmul.f32 %v1204, %v1262
    %v1264 = vrcp.pop %v1218
    %v1265 = vmul.f32 %v1218, %v1264
    %v1266 = vsub.f32 1.0, %v1265
    %v1267 = vmul.f32 %v1264, %v1266
    %v1268 = vadd.f32 %v1264, %v1267
    %vm1269 = vweird.f32 %v1218
    %vm1270 = vweird.f32 %v1264
    %vm1271 = vmor %vm1269, %vm1270
    %v1272 = vsel %vm1271, %v1264, %v1268
    %v1273 = vand.u32 2147483647, %v1218
    %vm1274 = vcmp.eq.f32.partialorder %v1273, 8.507059e+37
    %v1275 = vand.u32 %v1218, 2147483648
    %v1276 = vor.u32 1.1754944e-38, %v1275
    %v1277 = vsel %vm1274, %v1276, %v1272
    %v1278 = vmul.f32 %v1206, %v1277
    %1279 = vrot.lane.b32.xlu0 %v104, 40
    %v1280 = vpop.permute.xlu0 %1279
    %v1283 = vsel %vm123, %v1233, 0
    %1285 = vmatpush.msra.mxu0 0.0
    %1286 = vmatpush.msra.mxu0 0.0
    %1287 = vmatpush.msra.mxu0 0.0
    %1288 = vmatpush.msra.mxu0 0.0
    %1289 = vmatpush.msra.mxu0 0.0
    %1290 = vmatpush.msra.mxu0 0.0
    %1291 = vmatpush.msra.mxu0 0.0
    %1292 = vmatpush.msra.mxu0 0.0
    %1293 = vmatpush.msra.mxu0 0.0
    %1294 = vmatpush.msra.mxu0 0.0
    %1295 = vmatpush.msra.mxu0 0.0
    %1296 = vmatpush.msra.mxu0 0.0
    %1297 = vmatpush.msra.mxu0 0.0
    %1298 = vmatpush.msra.mxu0 0.0
    %1299 = vmatpush.msra.mxu0 0.0
    %1300 = vmatpush.msra.mxu0 %v1280
    %1301 = vmatmul.f32.gmra.mxu0 %v1283
    %v1302 = vpop.f32.mrf.mxu0
    %v1303 = vadd.f32 0.0, %v1302
    %1304 = vdwg.mxu0
    %1305 = vrot.lane.b32.xlu0 %v107, 40
    %v1306 = vpop.permute.xlu0 %1305
    %v1309 = vsel %vm123, %v1248, 0
    %1311 = vmatpush.msra.mxu0 0.0
    %1312 = vmatpush.msra.mxu0 0.0
    %1313 = vmatpush.msra.mxu0 0.0
    %1314 = vmatpush.msra.mxu0 0.0
    %1315 = vmatpush.msra.mxu0 0.0
    %1316 = vmatpush.msra.mxu0 0.0
    %1317 = vmatpush.msra.mxu0 0.0
    %1318 = vmatpush.msra.mxu0 0.0
    %1319 = vmatpush.msra.mxu0 0.0
    %1320 = vmatpush.msra.mxu0 0.0
    %1321 = vmatpush.msra.mxu0 0.0
    %1322 = vmatpush.msra.mxu0 0.0
    %1323 = vmatpush.msra.mxu0 0.0
    %1324 = vmatpush.msra.mxu0 0.0
    %1325 = vmatpush.msra.mxu0 0.0
    %1326 = vmatpush.msra.mxu0 %v1306
    %1327 = vmatmul.f32.gmra.mxu0 %v1309
    %v1328 = vpop.f32.mrf.mxu0
    %v1329 = vadd.f32 0.0, %v1328
    %1330 = vdwg.mxu0
    %1331 = vrot.lane.b32.xlu0 %v110, 40
    %v1332 = vpop.permute.xlu0 %1331
    %v1335 = vsel %vm123, %v1263, 0
    %1337 = vmatpush.msra.mxu0 0.0
    %1338 = vmatpush.msra.mxu0 0.0
    %1339 = vmatpush.msra.mxu0 0.0
    %1340 = vmatpush.msra.mxu0 0.0
    %1341 = vmatpush.msra.mxu0 0.0
    %1342 = vmatpush.msra.mxu0 0.0
    %1343 = vmatpush.msra.mxu0 0.0
    %1344 = vmatpush.msra.mxu0 0.0
    %1345 = vmatpush.msra.mxu0 0.0
    %1346 = vmatpush.msra.mxu0 0.0
    %1347 = vmatpush.msra.mxu0 0.0
    %1348 = vmatpush.msra.mxu0 0.0
    %1349 = vmatpush.msra.mxu0 0.0
    %1350 = vmatpush.msra.mxu0 0.0
    %1351 = vmatpush.msra.mxu0 0.0
    %1352 = vmatpush.msra.mxu0 %v1332
    %1353 = vmatmul.f32.gmra.mxu0 %v1335
    %v1354 = vpop.f32.mrf.mxu0
    %v1355 = vadd.f32 0.0, %v1354
    %1356 = vdwg.mxu0
    %1357 = vrot.lane.b32.xlu0 %v113, 40
    %v1358 = vpop.permute.xlu0 %1357
    %v1361 = vsel %vm123, %v1278, 0
    %1363 = vmatpush.msra.mxu0 0.0
    %1364 = vmatpush.msra.mxu0 0.0
    %1365 = vmatpush.msra.mxu0 0.0
    %1366 = vmatpush.msra.mxu0 0.0
    %1367 = vmatpush.msra.mxu0 0.0
    %1368 = vmatpush.msra.mxu0 0.0
    %1369 = vmatpush.msra.mxu0 0.0
    %1370 = vmatpush.msra.mxu0 0.0
    %1371 = vmatpush.msra.mxu0 0.0
    %1372 = vmatpush.msra.mxu0 0.0
    %1373 = vmatpush.msra.mxu0 0.0
    %1374 = vmatpush.msra.mxu0 0.0
    %1375 = vmatpush.msra.mxu0 0.0
    %1376 = vmatpush.msra.mxu0 0.0
    %1377 = vmatpush.msra.mxu0 0.0
    %1378 = vmatpush.msra.mxu0 %v1358
    %1379 = vmatmul.f32.gmra.mxu0 %v1361
    %v1380 = vpop.f32.mrf.mxu0
    %v1381 = vadd.f32 0.0, %v1380
    %1382 = vdwg.mxu0
    %1387 = vrot.lane.b32.xlu0 %v671, 8
    %v1388 = vpop.permute.xlu0 %1387
    %1389 = vrot.lane.b32.xlu0 %v697, 8
    %v1390 = vpop.permute.xlu0 %1389
    %1391 = vrot.lane.b32.xlu0 %v723, 8
    %v1392 = vpop.permute.xlu0 %1391
    %1393 = vrot.lane.b32.xlu0 %v749, 8
    %v1394 = vpop.permute.xlu0 %1393
    %1403 = vrot.lane.b32.xlu0 %v987, 16
    %v1404 = vpop.permute.xlu0 %1403
    %1405 = vrot.lane.b32.xlu0 %v1013, 16
    %v1406 = vpop.permute.xlu0 %1405
    %1407 = vrot.lane.b32.xlu0 %v1039, 16
    %v1408 = vpop.permute.xlu0 %1407
    %1409 = vrot.lane.b32.xlu0 %v1065, 16
    %v1410 = vpop.permute.xlu0 %1409
    %1419 = vrot.lane.b32.xlu0 %v1303, 24
    %v1420 = vpop.permute.xlu0 %1419
    %1421 = vrot.lane.b32.xlu0 %v1329, 24
    %v1422 = vpop.permute.xlu0 %1421
    %1423 = vrot.lane.b32.xlu0 %v1355, 24
    %v1424 = vpop.permute.xlu0 %1423
    %1425 = vrot.lane.b32.xlu0 %v1381, 24
    %v1426 = vpop.permute.xlu0 %1425
    %v1431 = vsel %vm123, %v355, %v1388
    %v1432 = vsel %vm123, %v381, %v1390
    %v1433 = vsel %vm123, %v407, %v1392
    %v1434 = vsel %vm123, %v433, %v1394
    %vm1435 = vcmask 130048
    %v1436 = vsel %vm1435, %v1431, %v1404
    %v1437 = vsel %vm1435, %v1432, %v1406
    %v1438 = vsel %vm1435, %v1433, %v1408
    %v1439 = vsel %vm1435, %v1434, %v1410
    %vm1440 = vcmask 195584
    %v1441 = vsel %vm1440, %v1436, %v1420
    %v1442 = vsel %vm1440, %v1437, %v1422
    %v1443 = vsel %vm1440, %v1438, %v1424
    %v1444 = vsel %vm1440, %v1439, %v1426
    %v1445 = vld [vmem:[#allocation7] sm:$0xff]
    %v1446 = vld [vmem:[#allocation7 + $0x8] sm:$0xff]
    %v1447 = vld [vmem:[#allocation7 + $0x10] sm:$0xff]
    %v1448 = vld [vmem:[#allocation7 + $0x18] sm:$0xff]
    %v1449 = vld [vmem:[%s3] sm:$0x1]
    %v1451 = vperm.slane %v1449, 0
    %v1454 = vsel %vm73, %v1441, 0
    %v1457 = vsel %vm73, %v1442, 0
    %v1460 = vsel %vm73, %v1443, 0
    %v1463 = vsel %vm73, %v1444, 0
    %1465 = vmatpush.msra.mxu0 0.0
    %1466 = vmatpush.msra.mxu0 0.0
    %1467 = vmatpush.msra.mxu0 0.0
    %1468 = vmatpush.msra.mxu0 0.0
    %1469 = vmatpush.msra.mxu0 0.0
    %1470 = vmatpush.msra.mxu0 0.0
    %1471 = vmatpush.msra.mxu0 0.0
    %1472 = vmatpush.msra.mxu0 0.0
    %1473 = vmatpush.msra.mxu0 0.0
    %1474 = vmatpush.msra.mxu0 0.0
    %1475 = vmatpush.msra.mxu0 0.0
    %1476 = vmatpush.msra.mxu0 0.0
    %1477 = vmatpush.msra.mxu0 %v1448
    %1478 = vmatpush.msra.mxu0 %v1447
    %1479 = vmatpush.msra.mxu0 %v1446
    %1480 = vmatpush.msra.mxu0 %v1445
    %1481 = vmatmul.f32.gmra.mxu0 %v1454
    %v1482 = vpop.f32.mrf.mxu0
    %v1483 = vadd.f32 %v1451, %v1482
    %1484 = vmatmul.f32.gmra.mxu0 %v1457
    %v1485 = vpop.f32.mrf.mxu0
    %v1486 = vadd.f32 %v1451, %v1485
    %1487 = vmatmul.f32.gmra.mxu0 %v1460
    %v1488 = vpop.f32.mrf.mxu0
    %v1489 = vadd.f32 %v1451, %v1488
    %1490 = vmatmul.f32.gmra.mxu0 %v1463
    %v1491 = vpop.f32.mrf.mxu0
    %v1492 = vadd.f32 %v1451, %v1491
    %1493 = vdwg.mxu0
    %1494 = vst.msk [vmem:[#allocation8] sm:$0xff] %vm73, %v1483
    %1495 = vst.msk [vmem:[#allocation8 + $0x8] sm:$0xff] %vm73, %v1486
    %1496 = vst.msk [vmem:[#allocation8 + $0x10] sm:$0xff] %vm73, %v1489
    %1497 = vst.msk [vmem:[#allocation8 + $0x18] sm:$0xff] %vm73, %v1492
    // Predicated region
    $region30: #{tpu_custom_call.1} parent=1 // pred_check
      _
    $region31: #{tpu_custom_call.1} parent=1 // pred_check_branch
      %1499 = sbr.rel (0) target = $region33
    $region32: #{tpu_custom_call.1} parent=1 // pred_region
      %1501 = vsyncadd [#allocation4], 0
      %s1502 = sshll.u32 [#allocation8], 4
      %s1503 = int_to_ptr.vmem [resolvable:$true] %s1502
      %s1504 = sshll.u32 %s4, 4
      %s1505 = int_to_ptr.hbm [resolvable:$true] %s1504
      %1510 = dma.vmem_to_hbm [thread:$0]  %s1503, 512, %s1505, [#allocation4], 128, 128, 8
    $region33: #{tpu_custom_call.1} parent=1 // pred_fallthru
      _
    // Predicated region
    $region34: #{tpu_custom_call.1} parent=1 // pred_check
      _
    $region35: #{tpu_custom_call.1} parent=1 // pred_check_branch
      %1512 = sbr.rel (0) target = $region37
    $region36: #{tpu_custom_call.1} parent=1 // pred_region
      %1514 = dma.done [#allocation4], 512
    $region37: #{tpu_custom_call.1} parent=1 // pred_fallthru
      _
    %1515 = vsyncpa [#allocation3], 1
    %1516 = vsyncpa [#allocation6], 1
    %1517 = vsyncpa [#allocation4], 1

</llo_original>
